<compile_context>
chip_gen: v5e
topology: v5e:2x2
jax: 0.10.0
libtpu: 0.0.40
codegen_flags: <defaults>
</compile_context>

<pallas_src>
import jax
import jax.numpy as jnp
from jax import lax
from jax.experimental import pallas as pl
from jax.experimental.pallas import tpu as pltpu


def _round_up(x, m):
    return (x + m - 1) // m * m


# ----------------------------------------------------------------------------
# Kernel
# ----------------------------------------------------------------------------
def lstm_classifier_kernel(len_ref, emb_ref, wih_ref, whh_ref, bg_ref,
                           wc_ref, bc_ref, yoh_ref,
                           scores_ref, nll_ref,
                           h_scr, c_scr, gx_scr):
    t_chunk = pl.program_id(1)
    n_tchunks = pl.num_programs(1)
    Bt, Hp = h_scr.shape
    Tt = gx_scr.shape[0] // Bt

    # reset recurrent state at the first time-chunk of every batch tile
    @pl.when(t_chunk == 0)
    def _():
        h_scr[...] = jnp.zeros_like(h_scr)
        c_scr[...] = jnp.zeros_like(c_scr)

    # ---- hoisted input projection: ONE large MXU matmul per time chunk ----
    # (Tt*Bt, Ep) bf16 @ (Ep, 4Hp) bf16 -> f32, folded bias.
    gx_scr[...] = (
        jnp.dot(emb_ref[...], wih_ref[...], preferred_element_type=jnp.float32)
        + bg_ref[...])

    w_hh = whh_ref[...]                      # (Hp, 4Hp) bf16, hoisted
    lens = len_ref[...]                      # (Bt, 1) int32
    t0 = t_chunk * Tt

    def step(t, carry):
        h, c = carry
        row0 = pl.multiple_of(t * Bt, 8)
        gates = gx_scr[pl.ds(row0, Bt), :] + jnp.dot(
            h.astype(jnp.bfloat16), w_hh, preferred_element_type=jnp.float32)
        # gate columns regrouped to [i, f, o | g]: one sigmoid over 3*Hp lanes
        sig = jax.nn.sigmoid(gates[:, 0:3 * Hp])
        i_g = sig[:, 0:Hp]
        f_g = sig[:, Hp:2 * Hp]
        o_g = sig[:, 2 * Hp:3 * Hp]
        g_g = jnp.tanh(gates[:, 3 * Hp:4 * Hp])
        c_new = f_g * c + i_g * g_g
        h_new = o_g * jnp.tanh(c_new)
        # pack_padded_sequence emulation: freeze state once t >= lengths[b]
        upd = (t0 + t) < lens                 # (Bt, 1) bool
        return jnp.where(upd, h_new, h), jnp.where(upd, c_new, c)

    h, c = lax.fori_loop(0, Tt, step, (h_scr[...], c_scr[...]), unroll=8)
    h_scr[...] = h
    c_scr[...] = c

    # ---- classifier head + cross-entropy on the last time chunk -----------
    @pl.when(t_chunk == n_tchunks - 1)
    def _():
        scores = (jnp.dot(h, wc_ref[...], preferred_element_type=jnp.float32)
                  + bc_ref[...])              # padded label cols hold ~-1e30
        scores_ref[...] = scores
        m = jnp.max(scores, axis=-1, keepdims=True)
        lse = m + jnp.log(jnp.sum(jnp.exp(scores - m), axis=-1, keepdims=True))
        logp = scores - lse
        # per-example NLL spread over the one-hot row; padded rows/cols are 0
        nll_ref[...] = -(yoh_ref[...] * logp)


# ----------------------------------------------------------------------------
# Parameter layout helpers (gate regroup [i,f,g,o] -> [i,f,o,g] + padding)
# ----------------------------------------------------------------------------
def _prep_gate_matrix(w, in_dim, in_dim_p, H, Hp, dtype):
    """PyTorch (4H, in) rows [i,f,g,o] -> padded (in_p, 4Hp) cols [i,f,o,g]."""
    wi, wf, wg, wo = jnp.split(w, 4, axis=0)
    cols = []
    for blk in (wi, wf, wo, wg):
        cols.append(jnp.pad(blk.T, ((0, in_dim_p - in_dim), (0, Hp - H))))
    return jnp.concatenate(cols, axis=1).astype(dtype)


def _prep_gate_bias(b_ih, b_hh, H, Hp):
    b = (b_ih + b_hh).astype(jnp.float32)
    bi, bf, bg, bo = jnp.split(b, 4)
    parts = [jnp.pad(x, (0, Hp - H)) for x in (bi, bf, bo, bg)]
    return jnp.concatenate(parts).reshape(1, 4 * Hp)


# ----------------------------------------------------------------------------
# Wrapper
# ----------------------------------------------------------------------------
def lstm_classifier_forward(x_tokens, lengths, y, p, *, time_chunk=64):
    """Embedding gather + layout in XLA; LSTM recurrence + head in Pallas."""
    slen, bs = x_tokens.shape
    E = p["embedding"].shape[1]
    H = p["w_hh"].shape[1]
    n_labels = p["w_c"].shape[0]

    # lane/sublane-aligned padded sizes
    Ep = _round_up(E, 128)
    Hp = _round_up(H, 128)
    Lp = _round_up(n_labels, 128)
    bsp = _round_up(bs, 8)

    # batch tile = leading "parallel" grid axis (megacore sharding on v7x)
    Bt = bsp if bsp <= 128 else 128
    bsp = _round_up(bsp, Bt)
    n_btiles = bsp // Bt

    # time chunk sized so f32 gate scratch + double-buffered bf16 emb chunk
    # stay well inside scoped VMEM on every TPU generation (incl. v7x 64 MiB)
    budget = 8 * 1024 * 1024
    tt_max = min(budget // (Bt * 4 * Hp * 4),
                 budget // (2 * Bt * Ep * 2),
                 time_chunk)
    Tt = max(8, min(_round_up(slen, 8), (tt_max // 8) * 8))
    slen_p = _round_up(slen, Tt)
    n_tchunks = slen_p // Tt

    # ---- embedding gather (XLA) -> bf16, batch-tile-major layout ----------
    # TODO(synk): fuse the embedding gather into the kernel (scalar-prefetched
    # token ids + per-row DMA) to avoid materialising (slen, bs, E) in HBM.
    emb = p["embedding"][x_tokens].astype(jnp.float32)          # (slen, bs, E)
    emb = jnp.pad(emb, ((0, slen_p - slen), (0, bsp - bs), (0, Ep - E)))
    emb = emb.astype(jnp.bfloat16)
    emb = emb.reshape(slen_p, n_btiles, Bt, Ep).transpose(1, 0, 2, 3)
    emb = emb.reshape(n_btiles, slen_p * Bt, Ep)

    # ---- weights -----------------------------------------------------------
    w_ih_t = _prep_gate_matrix(p["w_ih"], E, Ep, H, Hp, jnp.bfloat16)  # (Ep,4Hp)
    w_hh_t = _prep_gate_matrix(p["w_hh"], H, Hp, H, Hp, jnp.bfloat16)  # (Hp,4Hp)
    bg = _prep_gate_bias(p["b_ih"], p["b_hh"], H, Hp)                  # (1, 4Hp)
    w_c_t = jnp.pad(p["w_c"].T.astype(jnp.float32),
                    ((0, Hp - H), (0, Lp - n_labels)))                 # (Hp, Lp)
    b_c = jnp.concatenate(
        [p["b_c"].astype(jnp.float32),
         jnp.full((Lp - n_labels,), -1e30, jnp.float32)]).reshape(1, Lp)

    len2d = jnp.pad(lengths.astype(jnp.int32), (0, bsp - bs)).reshape(bsp, 1)
    y_pad = jnp.pad(y.astype(jnp.int32), (0, bsp - bs), constant_values=-1)
    yoh = jax.nn.one_hot(y_pad, Lp, dtype=jnp.float32)                 # (bsp,Lp)

    grid = (n_btiles, n_tchunks)
    scores_p, nll_p = pl.pallas_call(
        lstm_classifier_kernel,
        out_shape=(jax.ShapeDtypeStruct((bsp, Lp), jnp.float32),
                   jax.ShapeDtypeStruct((bsp, Lp), jnp.float32)),
        grid_spec=pltpu.PrefetchScalarGridSpec(
            num_scalar_prefetch=0,
            grid=grid,
            in_specs=[
                pl.BlockSpec((Bt, 1), lambda b, t: (b, 0)),             # lengths
                pl.BlockSpec((pl.Squeezed(), Tt * Bt, Ep),
                             lambda b, t: (b, t, 0)),                   # emb chunk
                pl.BlockSpec((Ep, 4 * Hp), lambda b, t: (0, 0)),        # W_ih
                pl.BlockSpec((Hp, 4 * Hp), lambda b, t: (0, 0)),        # W_hh
                pl.BlockSpec((1, 4 * Hp), lambda b, t: (0, 0)),         # gate bias
                pl.BlockSpec((Hp, Lp), lambda b, t: (0, 0)),            # W_c
                pl.BlockSpec((1, Lp), lambda b, t: (0, 0)),             # b_c
                pl.BlockSpec((Bt, Lp), lambda b, t: (b, 0)),            # y one-hot
            ],
            out_specs=(
                pl.BlockSpec((Bt, Lp), lambda b, t: (b, 0)),            # scores
                pl.BlockSpec((Bt, Lp), lambda b, t: (b, 0)),            # per-ex nll
            ),
            scratch_shapes=[
                pltpu.VMEM((Bt, Hp), jnp.float32),           # h state
                pltpu.VMEM((Bt, Hp), jnp.float32),           # c state
                pltpu.VMEM((Tt * Bt, 4 * Hp), jnp.float32),  # hoisted x-gates
            ]),
        compiler_params=pltpu.CompilerParams(
            dimension_semantics=("parallel", "arbitrary")),
    )(len2d, emb, w_ih_t, w_hh_t, bg, w_c_t, b_c, yoh)

    scores = scores_p[:bs, :n_labels]
    loss = jnp.sum(nll_p) / bs            # padded rows/cols contribute exactly 0
    return scores, loss


# ----------------------------------------------------------------------------
# Pure-JAX reference (mirrors PyTorch semantics, all f32)
# ----------------------------------------------------------------------------
def reference_forward(x_tokens, lengths, y, p):
    emb = p["embedding"][x_tokens]
    slen, bs, _ = emb.shape
    H = p["w_hh"].shape[1]
    h = jnp.zeros((bs, H), jnp.float32)
    c = jnp.zeros((bs, H), jnp.float32)
    for t in range(slen):
        gates = emb[t] @ p["w_ih"].T + h @ p["w_hh"].T + p["b_ih"] + p["b_hh"]
        i_g = jax.nn.sigmoid(gates[:, :H])
        f_g = jax.nn.sigmoid(gates[:, H:2 * H])
        g_g = jnp.tanh(gates[:, 2 * H:3 * H])
        o_g = jax.nn.sigmoid(gates[:, 3 * H:])
        c_new = f_g * c + i_g * g_g
        h_new = o_g * jnp.tanh(c_new)
        m = (t < lengths)[:, None]
        h = jnp.where(m, h_new, h)
        c = jnp.where(m, c_new, c)
    scores = h @ p["w_c"].T + p["b_c"]
    logp = jax.nn.log_softmax(scores, axis=-1)
    loss = -jnp.mean(logp[jnp.arange(bs), y])
    return scores, loss


if __name__ == "__main__":
    # small config consistent with the module
    slen, bs = 8, 2
    vocab, E, H, n_labels = 16, 32, 32, 4
    pad_index = 2

    key = jax.random.PRNGKey(0)
    ks = jax.random.split(key, 10)

    emb_table = 0.1 * jax.random.normal(ks[0], (vocab, E), jnp.float32)
    emb_table = emb_table.at[pad_index].set(0.0)           # padding_idx
    params = {
        "embedding": emb_table,
        "w_ih": 0.1 * jax.random.normal(ks[1], (4 * H, E), jnp.float32),
        "w_hh": 0.1 * jax.random.normal(ks[2], (4 * H, H), jnp.float32),
        "b_ih": 0.1 * jax.random.normal(ks[3], (4 * H,), jnp.float32),
        "b_hh": 0.1 * jax.random.normal(ks[4], (4 * H,), jnp.float32),
        "w_c": 0.1 * jax.random.normal(ks[5], (n_labels, H), jnp.float32),
        "b_c": 0.1 * jax.random.normal(ks[6], (n_labels,), jnp.float32),
    }

    lengths = jnp.array([8, 5], dtype=jnp.int32)           # (bs,)
    x = jax.random.randint(ks[7], (slen, bs), 0, vocab, dtype=jnp.int32)
    t_idx = jnp.arange(slen)[:, None]
    x = jnp.where(t_idx < lengths[None, :], x, pad_index)  # pad beyond lengths
    y = jax.random.randint(ks[8], (bs,), 0, n_labels, dtype=jnp.int32)

    scores, loss = lstm_classifier_forward(x, lengths, y, params)
    jax.block_until_ready((scores, loss))

    ref_scores, ref_loss = reference_forward(x, lengths, y, params)
    # bf16 operands with f32 accumulation: allow slightly looser tolerance
    assert jnp.allclose(scores, ref_scores, atol=5e-3, rtol=5e-3)
    assert jnp.allclose(loss, ref_loss, atol=5e-3, rtol=5e-3)

    print("KERNEL_OK")
</pallas_src>

<mosaic_0001>
module attributes {stable_mosaic.version = 11 : i64} {
  func.func @lstm_classifier_kernel(%arg0: i32, %arg1: i32, %arg2: memref<8x1xi32, #tpu.memory_space<vmem>>, %arg3: memref<1x64x128xbf16, #tpu.memory_space<vmem>>, %arg4: memref<128x512xbf16, #tpu.memory_space<vmem>>, %arg5: memref<128x512xbf16, #tpu.memory_space<vmem>>, %arg6: memref<1x512xf32, #tpu.memory_space<vmem>>, %arg7: memref<128x128xf32, #tpu.memory_space<vmem>>, %arg8: memref<1x128xf32, #tpu.memory_space<vmem>>, %arg9: memref<8x128xf32, #tpu.memory_space<vmem>>, %arg10: memref<8x128xf32, #tpu.memory_space<vmem>>, %arg11: memref<8x128xf32, #tpu.memory_space<vmem>>, %arg12: memref<8x128xf32, #tpu.memory_space<vmem>>, %arg13: memref<8x128xf32, #tpu.memory_space<vmem>>, %arg14: memref<64x512xf32, #tpu.memory_space<vmem>>) attributes {dimension_semantics = [#tpu.dimension_semantics<parallel>, #tpu.dimension_semantics<arbitrary>], iteration_bounds = array<i64: 1, 1>, scalar_prefetch = 0 : i64, scratch_operands = 3 : i64, tpu.core_type = #tpu.core_type<tc>, window_params = [{transform_indices = @transform_0, window_bounds = array<i64: 8, 1>}, {transform_indices = @transform_1, window_bounds = array<i64: 1, 64, 128>}, {pipeline_mode = #tpu.pipeline_mode<synchronous>, transform_indices = @transform_2, window_bounds = array<i64: 128, 512>}, {pipeline_mode = #tpu.pipeline_mode<synchronous>, transform_indices = @transform_3, window_bounds = array<i64: 128, 512>}, {pipeline_mode = #tpu.pipeline_mode<synchronous>, transform_indices = @transform_4, window_bounds = array<i64: 1, 512>}, {pipeline_mode = #tpu.pipeline_mode<synchronous>, transform_indices = @transform_5, window_bounds = array<i64: 128, 128>}, {pipeline_mode = #tpu.pipeline_mode<synchronous>, transform_indices = @transform_6, window_bounds = array<i64: 1, 128>}, {transform_indices = @transform_7, window_bounds = array<i64: 8, 128>}, {transform_indices = @transform_8, window_bounds = array<i64: 8, 128>}, {transform_indices = @transform_9, window_bounds = array<i64: 8, 128>}]} {
    %c0_i32 = arith.constant 0 : i32
    %0 = arith.cmpi eq, %arg1, %c0_i32 : i32
    %1 = arith.extui %0 : i1 to i32
    %c0_i32_0 = arith.constant 0 : i32
    %2 = arith.cmpi ne, %1, %c0_i32_0 : i32
    scf.if %2 {
      %cst_57 = arith.constant 0.000000e+00 : f32
      %277 = vector.broadcast %cst_57 : f32 to vector<8x128xf32>
      %c0_58 = arith.constant 0 : index
      %c0_59 = arith.constant 0 : index
      %278 = vector.load %arg12[%c0_58, %c0_59] : memref<8x128xf32, #tpu.memory_space<vmem>>, vector<8x128xf32>
      tpu.vector_store %arg12[%c0_58, %c0_59], %277 {strides = array<i32>} : memref<8x128xf32, #tpu.memory_space<vmem>>, vector<8x128xf32>,
      %cst_60 = arith.constant 0.000000e+00 : f32
      %279 = vector.broadcast %cst_60 : f32 to vector<8x128xf32>
      %c0_61 = arith.constant 0 : index
      %c0_62 = arith.constant 0 : index
      %280 = vector.load %arg13[%c0_61, %c0_62] : memref<8x128xf32, #tpu.memory_space<vmem>>, vector<8x128xf32>
      tpu.vector_store %arg13[%c0_61, %c0_62], %279 {strides = array<i32>} : memref<8x128xf32, #tpu.memory_space<vmem>>, vector<8x128xf32>,
    } else {
    }
    %c0 = arith.constant 0 : index
    %c0_1 = arith.constant 0 : index
    %c0_2 = arith.constant 0 : index
    %3 = vector.load %arg3[%c0, %c0_1, %c0_2] : memref<1x64x128xbf16, #tpu.memory_space<vmem>>, vector<1x64x128xbf16>
    %4 = vector.shape_cast %3 : vector<1x64x128xbf16> to vector<64x128xbf16>
    %c0_3 = arith.constant 0 : index
    %c0_4 = arith.constant 0 : index
    %5 = vector.load %arg4[%c0_3, %c0_4] : memref<128x512xbf16, #tpu.memory_space<vmem>>, vector<128x512xbf16>
    %cst = arith.constant dense<0.000000e+00> : vector<64x512xf32>
    %6 = tpu.matmul %4, %5, %cst {dimension_numbers = #tpu.dot_dimension_numbers<[1], [0], [0], [1], [0, 0, 1, 1], [], []>} : vector<64x128xbf16>, vector<128x512xbf16>, vector<64x512xf32> -> vector<64x512xf32>
    %c0_5 = arith.constant 0 : index
    %c0_6 = arith.constant 0 : index
    %7 = vector.load %arg6[%c0_5, %c0_6] : memref<1x512xf32, #tpu.memory_space<vmem>>, vector<1x512xf32>
    %8 = vector.broadcast %7 : vector<1x512xf32> to vector<64x512xf32>
    %9 = arith.addf %6, %8 : vector<64x512xf32>
    %c0_7 = arith.constant 0 : index
    %c0_8 = arith.constant 0 : index
    %10 = vector.load %arg14[%c0_7, %c0_8] : memref<64x512xf32, #tpu.memory_space<vmem>>, vector<64x512xf32>
    tpu.vector_store %arg14[%c0_7, %c0_8], %9 {strides = array<i32>} : memref<64x512xf32, #tpu.memory_space<vmem>>, vector<64x512xf32>,
    %c0_9 = arith.constant 0 : index
    %c0_10 = arith.constant 0 : index
    %11 = vector.load %arg5[%c0_9, %c0_10] : memref<128x512xbf16, #tpu.memory_space<vmem>>, vector<128x512xbf16>
    %c0_11 = arith.constant 0 : index
    %c0_12 = arith.constant 0 : index
    %12 = vector.load %arg2[%c0_11, %c0_12] : memref<8x1xi32, #tpu.memory_space<vmem>>, vector<8x1xi32>
    %c8_i32 = arith.constant 8 : i32
    %13 = arith.muli %arg1, %c8_i32 : i32
    %c0_13 = arith.constant 0 : index
    %c0_14 = arith.constant 0 : index
    %14 = vector.load %arg12[%c0_13, %c0_14] : memref<8x128xf32, #tpu.memory_space<vmem>>, vector<8x128xf32>
    %c0_15 = arith.constant 0 : index
    %c0_16 = arith.constant 0 : index
    %15 = vector.load %arg13[%c0_15, %c0_16] : memref<8x128xf32, #tpu.memory_space<vmem>>, vector<8x128xf32>
    %c0_i32_17 = arith.constant 0 : i32
    %c8_i32_18 = arith.constant 8 : i32
    %16 = arith.muli %c0_i32_17, %c8_i32_18 : i32
    %17 = tpu.assume_multiple %16, 8 : i32
    %18 = arith.index_cast %17 : i32 to index
    %c0_19 = arith.constant 0 : index
    %19 = vector.load %arg14[%18, %c0_19] : memref<64x512xf32, #tpu.memory_space<vmem>>, vector<8x512xf32>
    %20 = arith.truncf %14 : vector<8x128xf32> to vector<8x128xbf16>
    %cst_20 = arith.constant dense<0.000000e+00> : vector<8x512xf32>
    %21 = tpu.matmul %20, %11, %cst_20 {dimension_numbers = #tpu.dot_dimension_numbers<[1], [0], [0], [1], [0, 0, 1, 1], [], []>} : vector<8x128xbf16>, vector<128x512xbf16>, vector<8x512xf32> -> vector<8x512xf32>
    %22 = arith.addf %19, %21 : vector<8x512xf32>
    %23 = vector.extract_strided_slice %22 {offsets = [0, 0], sizes = [8, 384], strides = [1, 1]} : vector<8x512xf32> to vector<8x384xf32>
    %24 = arith.negf %23 : vector<8x384xf32>
    %25 = math.exp %24 : vector<8x384xf32>
    %cst_21 = arith.constant 1.000000e+00 : f32
    %26 = vector.broadcast %cst_21 : f32 to vector<8x384xf32>
    %27 = arith.addf %26, %25 : vector<8x384xf32>
    %28 = arith.divf %26, %27 : vector<8x384xf32>
    %29 = vector.extract_strided_slice %28 {offsets = [0, 0], sizes = [8, 128], strides = [1, 1]} : vector<8x384xf32> to vector<8x128xf32>
    %30 = vector.extract_strided_slice %28 {offsets = [0, 128], sizes = [8, 128], strides = [1, 1]} : vector<8x384xf32> to vector<8x128xf32>
    %31 = vector.extract_strided_slice %28 {offsets = [0, 256], sizes = [8, 128], strides = [1, 1]} : vector<8x384xf32> to vector<8x128xf32>
    %32 = vector.extract_strided_slice %22 {offsets = [0, 384], sizes = [8, 128], strides = [1, 1]} : vector<8x512xf32> to vector<8x128xf32>
    %33 = math.tanh %32 : vector<8x128xf32>
    %34 = arith.mulf %30, %15 : vector<8x128xf32>
    %35 = arith.mulf %29, %33 : vector<8x128xf32>
    %36 = arith.addf %34, %35 : vector<8x128xf32>
    %37 = math.tanh %36 : vector<8x128xf32>
    %38 = arith.mulf %31, %37 : vector<8x128xf32>
    %39 = arith.addi %13, %c0_i32_17 : i32
    %40 = vector.broadcast %39 : i32 to vector<8x1xi32>
    %41 = arith.cmpi slt, %40, %12 : vector<8x1xi32>
    %42 = vector.shape_cast %41 : vector<8x1xi1> to vector<8x1xi1>
    %43 = vector.broadcast %42 : vector<8x1xi1> to vector<8x128xi1>
    %44 = arith.select %43, %38, %14 : vector<8x128xi1>, vector<8x128xf32>
    %45 = vector.shape_cast %41 : vector<8x1xi1> to vector<8x1xi1>
    %46 = vector.broadcast %45 : vector<8x1xi1> to vector<8x128xi1>
    %47 = arith.select %46, %36, %15 : vector<8x128xi1>, vector<8x128xf32>
    %c1_i32 = arith.constant 1 : i32
    %c8_i32_22 = arith.constant 8 : i32
    %48 = arith.muli %c1_i32, %c8_i32_22 : i32
    %49 = tpu.assume_multiple %48, 8 : i32
    %50 = arith.index_cast %49 : i32 to index
    %c0_23 = arith.constant 0 : index
    %51 = vector.load %arg14[%50, %c0_23] : memref<64x512xf32, #tpu.memory_space<vmem>>, vector<8x512xf32>
    %52 = arith.truncf %44 : vector<8x128xf32> to vector<8x128xbf16>
    %cst_24 = arith.constant dense<0.000000e+00> : vector<8x512xf32>
    %53 = tpu.matmul %52, %11, %cst_24 {dimension_numbers = #tpu.dot_dimension_numbers<[1], [0], [0], [1], [0, 0, 1, 1], [], []>} : vector<8x128xbf16>, vector<128x512xbf16>, vector<8x512xf32> -> vector<8x512xf32>
    %54 = arith.addf %51, %53 : vector<8x512xf32>
    %55 = vector.extract_strided_slice %54 {offsets = [0, 0], sizes = [8, 384], strides = [1, 1]} : vector<8x512xf32> to vector<8x384xf32>
    %56 = arith.negf %55 : vector<8x384xf32>
    %57 = math.exp %56 : vector<8x384xf32>
    %cst_25 = arith.constant 1.000000e+00 : f32
    %58 = vector.broadcast %cst_25 : f32 to vector<8x384xf32>
    %59 = arith.addf %58, %57 : vector<8x384xf32>
    %60 = arith.divf %58, %59 : vector<8x384xf32>
    %61 = vector.extract_strided_slice %60 {offsets = [0, 0], sizes = [8, 128], strides = [1, 1]} : vector<8x384xf32> to vector<8x128xf32>
    %62 = vector.extract_strided_slice %60 {offsets = [0, 128], sizes = [8, 128], strides = [1, 1]} : vector<8x384xf32> to vector<8x128xf32>
    %63 = vector.extract_strided_slice %60 {offsets = [0, 256], sizes = [8, 128], strides = [1, 1]} : vector<8x384xf32> to vector<8x128xf32>
    %64 = vector.extract_strided_slice %54 {offsets = [0, 384], sizes = [8, 128], strides = [1, 1]} : vector<8x512xf32> to vector<8x128xf32>
    %65 = math.tanh %64 : vector<8x128xf32>
    %66 = arith.mulf %62, %47 : vector<8x128xf32>
    %67 = arith.mulf %61, %65 : vector<8x128xf32>
    %68 = arith.addf %66, %67 : vector<8x128xf32>
    %69 = math.tanh %68 : vector<8x128xf32>
    %70 = arith.mulf %63, %69 : vector<8x128xf32>
    %71 = arith.addi %13, %c1_i32 : i32
    %72 = vector.broadcast %71 : i32 to vector<8x1xi32>
    %73 = arith.cmpi slt, %72, %12 : vector<8x1xi32>
    %74 = vector.shape_cast %73 : vector<8x1xi1> to vector<8x1xi1>
    %75 = vector.broadcast %74 : vector<8x1xi1> to vector<8x128xi1>
    %76 = arith.select %75, %70, %44 : vector<8x128xi1>, vector<8x128xf32>
    %77 = vector.shape_cast %73 : vector<8x1xi1> to vector<8x1xi1>
    %78 = vector.broadcast %77 : vector<8x1xi1> to vector<8x128xi1>
    %79 = arith.select %78, %68, %47 : vector<8x128xi1>, vector<8x128xf32>
    %c2_i32 = arith.constant 2 : i32
    %c8_i32_26 = arith.constant 8 : i32
    %80 = arith.muli %c2_i32, %c8_i32_26 : i32
    %81 = tpu.assume_multiple %80, 8 : i32
    %82 = arith.index_cast %81 : i32 to index
    %c0_27 = arith.constant 0 : index
    %83 = vector.load %arg14[%82, %c0_27] : memref<64x512xf32, #tpu.memory_space<vmem>>, vector<8x512xf32>
    %84 = arith.truncf %76 : vector<8x128xf32> to vector<8x128xbf16>
    %cst_28 = arith.constant dense<0.000000e+00> : vector<8x512xf32>
    %85 = tpu.matmul %84, %11, %cst_28 {dimension_numbers = #tpu.dot_dimension_numbers<[1], [0], [0], [1], [0, 0, 1, 1], [], []>} : vector<8x128xbf16>, vector<128x512xbf16>, vector<8x512xf32> -> vector<8x512xf32>
    %86 = arith.addf %83, %85 : vector<8x512xf32>
    %87 = vector.extract_strided_slice %86 {offsets = [0, 0], sizes = [8, 384], strides = [1, 1]} : vector<8x512xf32> to vector<8x384xf32>
    %88 = arith.negf %87 : vector<8x384xf32>
    %89 = math.exp %88 : vector<8x384xf32>
    %cst_29 = arith.constant 1.000000e+00 : f32
    %90 = vector.broadcast %cst_29 : f32 to vector<8x384xf32>
    %91 = arith.addf %90, %89 : vector<8x384xf32>
    %92 = arith.divf %90, %91 : vector<8x384xf32>
    %93 = vector.extract_strided_slice %92 {offsets = [0, 0], sizes = [8, 128], strides = [1, 1]} : vector<8x384xf32> to vector<8x128xf32>
    %94 = vector.extract_strided_slice %92 {offsets = [0, 128], sizes = [8, 128], strides = [1, 1]} : vector<8x384xf32> to vector<8x128xf32>
    %95 = vector.extract_strided_slice %92 {offsets = [0, 256], sizes = [8, 128], strides = [1, 1]} : vector<8x384xf32> to vector<8x128xf32>
    %96 = vector.extract_strided_slice %86 {offsets = [0, 384], sizes = [8, 128], strides = [1, 1]} : vector<8x512xf32> to vector<8x128xf32>
    %97 = math.tanh %96 : vector<8x128xf32>
    %98 = arith.mulf %94, %79 : vector<8x128xf32>
    %99 = arith.mulf %93, %97 : vector<8x128xf32>
    %100 = arith.addf %98, %99 : vector<8x128xf32>
    %101 = math.tanh %100 : vector<8x128xf32>
    %102 = arith.mulf %95, %101 : vector<8x128xf32>
    %103 = arith.addi %13, %c2_i32 : i32
    %104 = vector.broadcast %103 : i32 to vector<8x1xi32>
    %105 = arith.cmpi slt, %104, %12 : vector<8x1xi32>
    %106 = vector.shape_cast %105 : vector<8x1xi1> to vector<8x1xi1>
    %107 = vector.broadcast %106 : vector<8x1xi1> to vector<8x128xi1>
    %108 = arith.select %107, %102, %76 : vector<8x128xi1>, vector<8x128xf32>
    %109 = vector.shape_cast %105 : vector<8x1xi1> to vector<8x1xi1>
    %110 = vector.broadcast %109 : vector<8x1xi1> to vector<8x128xi1>
    %111 = arith.select %110, %100, %79 : vector<8x128xi1>, vector<8x128xf32>
    %c3_i32 = arith.constant 3 : i32
    %c8_i32_30 = arith.constant 8 : i32
    %112 = arith.muli %c3_i32, %c8_i32_30 : i32
    %113 = tpu.assume_multiple %112, 8 : i32
    %114 = arith.index_cast %113 : i32 to index
    %c0_31 = arith.constant 0 : index
    %115 = vector.load %arg14[%114, %c0_31] : memref<64x512xf32, #tpu.memory_space<vmem>>, vector<8x512xf32>
    %116 = arith.truncf %108 : vector<8x128xf32> to vector<8x128xbf16>
    %cst_32 = arith.constant dense<0.000000e+00> : vector<8x512xf32>
    %117 = tpu.matmul %116, %11, %cst_32 {dimension_numbers = #tpu.dot_dimension_numbers<[1], [0], [0], [1], [0, 0, 1, 1], [], []>} : vector<8x128xbf16>, vector<128x512xbf16>, vector<8x512xf32> -> vector<8x512xf32>
    %118 = arith.addf %115, %117 : vector<8x512xf32>
    %119 = vector.extract_strided_slice %118 {offsets = [0, 0], sizes = [8, 384], strides = [1, 1]} : vector<8x512xf32> to vector<8x384xf32>
    %120 = arith.negf %119 : vector<8x384xf32>
    %121 = math.exp %120 : vector<8x384xf32>
    %cst_33 = arith.constant 1.000000e+00 : f32
    %122 = vector.broadcast %cst_33 : f32 to vector<8x384xf32>
    %123 = arith.addf %122, %121 : vector<8x384xf32>
    %124 = arith.divf %122, %123 : vector<8x384xf32>
    %125 = vector.extract_strided_slice %124 {offsets = [0, 0], sizes = [8, 128], strides = [1, 1]} : vector<8x384xf32> to vector<8x128xf32>
    %126 = vector.extract_strided_slice %124 {offsets = [0, 128], sizes = [8, 128], strides = [1, 1]} : vector<8x384xf32> to vector<8x128xf32>
    %127 = vector.extract_strided_slice %124 {offsets = [0, 256], sizes = [8, 128], strides = [1, 1]} : vector<8x384xf32> to vector<8x128xf32>
    %128 = vector.extract_strided_slice %118 {offsets = [0, 384], sizes = [8, 128], strides = [1, 1]} : vector<8x512xf32> to vector<8x128xf32>
    %129 = math.tanh %128 : vector<8x128xf32>
    %130 = arith.mulf %126, %111 : vector<8x128xf32>
    %131 = arith.mulf %125, %129 : vector<8x128xf32>
    %132 = arith.addf %130, %131 : vector<8x128xf32>
    %133 = math.tanh %132 : vector<8x128xf32>
    %134 = arith.mulf %127, %133 : vector<8x128xf32>
    %135 = arith.addi %13, %c3_i32 : i32
    %136 = vector.broadcast %135 : i32 to vector<8x1xi32>
    %137 = arith.cmpi slt, %136, %12 : vector<8x1xi32>
    %138 = vector.shape_cast %137 : vector<8x1xi1> to vector<8x1xi1>
    %139 = vector.broadcast %138 : vector<8x1xi1> to vector<8x128xi1>
    %140 = arith.select %139, %134, %108 : vector<8x128xi1>, vector<8x128xf32>
    %141 = vector.shape_cast %137 : vector<8x1xi1> to vector<8x1xi1>
    %142 = vector.broadcast %141 : vector<8x1xi1> to vector<8x128xi1>
    %143 = arith.select %142, %132, %111 : vector<8x128xi1>, vector<8x128xf32>
    %c4_i32 = arith.constant 4 : i32
    %c8_i32_34 = arith.constant 8 : i32
    %144 = arith.muli %c4_i32, %c8_i32_34 : i32
    %145 = tpu.assume_multiple %144, 8 : i32
    %146 = arith.index_cast %145 : i32 to index
    %c0_35 = arith.constant 0 : index
    %147 = vector.load %arg14[%146, %c0_35] : memref<64x512xf32, #tpu.memory_space<vmem>>, vector<8x512xf32>
    %148 = arith.truncf %140 : vector<8x128xf32> to vector<8x128xbf16>
    %cst_36 = arith.constant dense<0.000000e+00> : vector<8x512xf32>
    %149 = tpu.matmul %148, %11, %cst_36 {dimension_numbers = #tpu.dot_dimension_numbers<[1], [0], [0], [1], [0, 0, 1, 1], [], []>} : vector<8x128xbf16>, vector<128x512xbf16>, vector<8x512xf32> -> vector<8x512xf32>
    %150 = arith.addf %147, %149 : vector<8x512xf32>
    %151 = vector.extract_strided_slice %150 {offsets = [0, 0], sizes = [8, 384], strides = [1, 1]} : vector<8x512xf32> to vector<8x384xf32>
    %152 = arith.negf %151 : vector<8x384xf32>
    %153 = math.exp %152 : vector<8x384xf32>
    %cst_37 = arith.constant 1.000000e+00 : f32
    %154 = vector.broadcast %cst_37 : f32 to vector<8x384xf32>
    %155 = arith.addf %154, %153 : vector<8x384xf32>
    %156 = arith.divf %154, %155 : vector<8x384xf32>
    %157 = vector.extract_strided_slice %156 {offsets = [0, 0], sizes = [8, 128], strides = [1, 1]} : vector<8x384xf32> to vector<8x128xf32>
    %158 = vector.extract_strided_slice %156 {offsets = [0, 128], sizes = [8, 128], strides = [1, 1]} : vector<8x384xf32> to vector<8x128xf32>
    %159 = vector.extract_strided_slice %156 {offsets = [0, 256], sizes = [8, 128], strides = [1, 1]} : vector<8x384xf32> to vector<8x128xf32>
    %160 = vector.extract_strided_slice %150 {offsets = [0, 384], sizes = [8, 128], strides = [1, 1]} : vector<8x512xf32> to vector<8x128xf32>
    %161 = math.tanh %160 : vector<8x128xf32>
    %162 = arith.mulf %158, %143 : vector<8x128xf32>
    %163 = arith.mulf %157, %161 : vector<8x128xf32>
    %164 = arith.addf %162, %163 : vector<8x128xf32>
    %165 = math.tanh %164 : vector<8x128xf32>
    %166 = arith.mulf %159, %165 : vector<8x128xf32>
    %167 = arith.addi %13, %c4_i32 : i32
    %168 = vector.broadcast %167 : i32 to vector<8x1xi32>
    %169 = arith.cmpi slt, %168, %12 : vector<8x1xi32>
    %170 = vector.shape_cast %169 : vector<8x1xi1> to vector<8x1xi1>
    %171 = vector.broadcast %170 : vector<8x1xi1> to vector<8x128xi1>
    %172 = arith.select %171, %166, %140 : vector<8x128xi1>, vector<8x128xf32>
    %173 = vector.shape_cast %169 : vector<8x1xi1> to vector<8x1xi1>
    %174 = vector.broadcast %173 : vector<8x1xi1> to vector<8x128xi1>
    %175 = arith.select %174, %164, %143 : vector<8x128xi1>, vector<8x128xf32>
    %c5_i32 = arith.constant 5 : i32
    %c8_i32_38 = arith.constant 8 : i32
    %176 = arith.muli %c5_i32, %c8_i32_38 : i32
    %177 = tpu.assume_multiple %176, 8 : i32
    %178 = arith.index_cast %177 : i32 to index
    %c0_39 = arith.constant 0 : index
    %179 = vector.load %arg14[%178, %c0_39] : memref<64x512xf32, #tpu.memory_space<vmem>>, vector<8x512xf32>
    %180 = arith.truncf %172 : vector<8x128xf32> to vector<8x128xbf16>
    %cst_40 = arith.constant dense<0.000000e+00> : vector<8x512xf32>
    %181 = tpu.matmul %180, %11, %cst_40 {dimension_numbers = #tpu.dot_dimension_numbers<[1], [0], [0], [1], [0, 0, 1, 1], [], []>} : vector<8x128xbf16>, vector<128x512xbf16>, vector<8x512xf32> -> vector<8x512xf32>
    %182 = arith.addf %179, %181 : vector<8x512xf32>
    %183 = vector.extract_strided_slice %182 {offsets = [0, 0], sizes = [8, 384], strides = [1, 1]} : vector<8x512xf32> to vector<8x384xf32>
    %184 = arith.negf %183 : vector<8x384xf32>
    %185 = math.exp %184 : vector<8x384xf32>
    %cst_41 = arith.constant 1.000000e+00 : f32
    %186 = vector.broadcast %cst_41 : f32 to vector<8x384xf32>
    %187 = arith.addf %186, %185 : vector<8x384xf32>
    %188 = arith.divf %186, %187 : vector<8x384xf32>
    %189 = vector.extract_strided_slice %188 {offsets = [0, 0], sizes = [8, 128], strides = [1, 1]} : vector<8x384xf32> to vector<8x128xf32>
    %190 = vector.extract_strided_slice %188 {offsets = [0, 128], sizes = [8, 128], strides = [1, 1]} : vector<8x384xf32> to vector<8x128xf32>
    %191 = vector.extract_strided_slice %188 {offsets = [0, 256], sizes = [8, 128], strides = [1, 1]} : vector<8x384xf32> to vector<8x128xf32>
    %192 = vector.extract_strided_slice %182 {offsets = [0, 384], sizes = [8, 128], strides = [1, 1]} : vector<8x512xf32> to vector<8x128xf32>
    %193 = math.tanh %192 : vector<8x128xf32>
    %194 = arith.mulf %190, %175 : vector<8x128xf32>
    %195 = arith.mulf %189, %193 : vector<8x128xf32>
    %196 = arith.addf %194, %195 : vector<8x128xf32>
    %197 = math.tanh %196 : vector<8x128xf32>
    %198 = arith.mulf %191, %197 : vector<8x128xf32>
    %199 = arith.addi %13, %c5_i32 : i32
    %200 = vector.broadcast %199 : i32 to vector<8x1xi32>
    %201 = arith.cmpi slt, %200, %12 : vector<8x1xi32>
    %202 = vector.shape_cast %201 : vector<8x1xi1> to vector<8x1xi1>
    %203 = vector.broadcast %202 : vector<8x1xi1> to vector<8x128xi1>
    %204 = arith.select %203, %198, %172 : vector<8x128xi1>, vector<8x128xf32>
    %205 = vector.shape_cast %201 : vector<8x1xi1> to vector<8x1xi1>
    %206 = vector.broadcast %205 : vector<8x1xi1> to vector<8x128xi1>
    %207 = arith.select %206, %196, %175 : vector<8x128xi1>, vector<8x128xf32>
    %c6_i32 = arith.constant 6 : i32
    %c8_i32_42 = arith.constant 8 : i32
    %208 = arith.muli %c6_i32, %c8_i32_42 : i32
    %209 = tpu.assume_multiple %208, 8 : i32
    %210 = arith.index_cast %209 : i32 to index
    %c0_43 = arith.constant 0 : index
    %211 = vector.load %arg14[%210, %c0_43] : memref<64x512xf32, #tpu.memory_space<vmem>>, vector<8x512xf32>
    %212 = arith.truncf %204 : vector<8x128xf32> to vector<8x128xbf16>
    %cst_44 = arith.constant dense<0.000000e+00> : vector<8x512xf32>
    %213 = tpu.matmul %212, %11, %cst_44 {dimension_numbers = #tpu.dot_dimension_numbers<[1], [0], [0], [1], [0, 0, 1, 1], [], []>} : vector<8x128xbf16>, vector<128x512xbf16>, vector<8x512xf32> -> vector<8x512xf32>
    %214 = arith.addf %211, %213 : vector<8x512xf32>
    %215 = vector.extract_strided_slice %214 {offsets = [0, 0], sizes = [8, 384], strides = [1, 1]} : vector<8x512xf32> to vector<8x384xf32>
    %216 = arith.negf %215 : vector<8x384xf32>
    %217 = math.exp %216 : vector<8x384xf32>
    %cst_45 = arith.constant 1.000000e+00 : f32
    %218 = vector.broadcast %cst_45 : f32 to vector<8x384xf32>
    %219 = arith.addf %218, %217 : vector<8x384xf32>
    %220 = arith.divf %218, %219 : vector<8x384xf32>
    %221 = vector.extract_strided_slice %220 {offsets = [0, 0], sizes = [8, 128], strides = [1, 1]} : vector<8x384xf32> to vector<8x128xf32>
    %222 = vector.extract_strided_slice %220 {offsets = [0, 128], sizes = [8, 128], strides = [1, 1]} : vector<8x384xf32> to vector<8x128xf32>
    %223 = vector.extract_strided_slice %220 {offsets = [0, 256], sizes = [8, 128], strides = [1, 1]} : vector<8x384xf32> to vector<8x128xf32>
    %224 = vector.extract_strided_slice %214 {offsets = [0, 384], sizes = [8, 128], strides = [1, 1]} : vector<8x512xf32> to vector<8x128xf32>
    %225 = math.tanh %224 : vector<8x128xf32>
    %226 = arith.mulf %222, %207 : vector<8x128xf32>
    %227 = arith.mulf %221, %225 : vector<8x128xf32>
    %228 = arith.addf %226, %227 : vector<8x128xf32>
    %229 = math.tanh %228 : vector<8x128xf32>
    %230 = arith.mulf %223, %229 : vector<8x128xf32>
    %231 = arith.addi %13, %c6_i32 : i32
    %232 = vector.broadcast %231 : i32 to vector<8x1xi32>
    %233 = arith.cmpi slt, %232, %12 : vector<8x1xi32>
    %234 = vector.shape_cast %233 : vector<8x1xi1> to vector<8x1xi1>
    %235 = vector.broadcast %234 : vector<8x1xi1> to vector<8x128xi1>
    %236 = arith.select %235, %230, %204 : vector<8x128xi1>, vector<8x128xf32>
    %237 = vector.shape_cast %233 : vector<8x1xi1> to vector<8x1xi1>
    %238 = vector.broadcast %237 : vector<8x1xi1> to vector<8x128xi1>
    %239 = arith.select %238, %228, %207 : vector<8x128xi1>, vector<8x128xf32>
    %c7_i32 = arith.constant 7 : i32
    %c8_i32_46 = arith.constant 8 : i32
    %240 = arith.muli %c7_i32, %c8_i32_46 : i32
    %241 = tpu.assume_multiple %240, 8 : i32
    %242 = arith.index_cast %241 : i32 to index
    %c0_47 = arith.constant 0 : index
    %243 = vector.load %arg14[%242, %c0_47] : memref<64x512xf32, #tpu.memory_space<vmem>>, vector<8x512xf32>
    %244 = arith.truncf %236 : vector<8x128xf32> to vector<8x128xbf16>
    %cst_48 = arith.constant dense<0.000000e+00> : vector<8x512xf32>
    %245 = tpu.matmul %244, %11, %cst_48 {dimension_numbers = #tpu.dot_dimension_numbers<[1], [0], [0], [1], [0, 0, 1, 1], [], []>} : vector<8x128xbf16>, vector<128x512xbf16>, vector<8x512xf32> -> vector<8x512xf32>
    %246 = arith.addf %243, %245 : vector<8x512xf32>
    %247 = vector.extract_strided_slice %246 {offsets = [0, 0], sizes = [8, 384], strides = [1, 1]} : vector<8x512xf32> to vector<8x384xf32>
    %248 = arith.negf %247 : vector<8x384xf32>
    %249 = math.exp %248 : vector<8x384xf32>
    %cst_49 = arith.constant 1.000000e+00 : f32
    %250 = vector.broadcast %cst_49 : f32 to vector<8x384xf32>
    %251 = arith.addf %250, %249 : vector<8x384xf32>
    %252 = arith.divf %250, %251 : vector<8x384xf32>
    %253 = vector.extract_strided_slice %252 {offsets = [0, 0], sizes = [8, 128], strides = [1, 1]} : vector<8x384xf32> to vector<8x128xf32>
    %254 = vector.extract_strided_slice %252 {offsets = [0, 128], sizes = [8, 128], strides = [1, 1]} : vector<8x384xf32> to vector<8x128xf32>
    %255 = vector.extract_strided_slice %252 {offsets = [0, 256], sizes = [8, 128], strides = [1, 1]} : vector<8x384xf32> to vector<8x128xf32>
    %256 = vector.extract_strided_slice %246 {offsets = [0, 384], sizes = [8, 128], strides = [1, 1]} : vector<8x512xf32> to vector<8x128xf32>
    %257 = math.tanh %256 : vector<8x128xf32>
    %258 = arith.mulf %254, %239 : vector<8x128xf32>
    %259 = arith.mulf %253, %257 : vector<8x128xf32>
    %260 = arith.addf %258, %259 : vector<8x128xf32>
    %261 = math.tanh %260 : vector<8x128xf32>
    %262 = arith.mulf %255, %261 : vector<8x128xf32>
    %263 = arith.addi %13, %c7_i32 : i32
    %264 = vector.broadcast %263 : i32 to vector<8x1xi32>
    %265 = arith.cmpi slt, %264, %12 : vector<8x1xi32>
    %266 = vector.shape_cast %265 : vector<8x1xi1> to vector<8x1xi1>
    %267 = vector.broadcast %266 : vector<8x1xi1> to vector<8x128xi1>
    %268 = arith.select %267, %262, %236 : vector<8x128xi1>, vector<8x128xf32>
    %269 = vector.shape_cast %265 : vector<8x1xi1> to vector<8x1xi1>
    %270 = vector.broadcast %269 : vector<8x1xi1> to vector<8x128xi1>
    %271 = arith.select %270, %260, %239 : vector<8x128xi1>, vector<8x128xf32>
    %c8_i32_50 = arith.constant 8 : i32
    %c0_51 = arith.constant 0 : index
    %c0_52 = arith.constant 0 : index
    %272 = vector.load %arg12[%c0_51, %c0_52] : memref<8x128xf32, #tpu.memory_space<vmem>>, vector<8x128xf32>
    tpu.vector_store %arg12[%c0_51, %c0_52], %268 {strides = array<i32>} : memref<8x128xf32, #tpu.memory_space<vmem>>, vector<8x128xf32>,
    %c0_53 = arith.constant 0 : index
    %c0_54 = arith.constant 0 : index
    %273 = vector.load %arg13[%c0_53, %c0_54] : memref<8x128xf32, #tpu.memory_space<vmem>>, vector<8x128xf32>
    tpu.vector_store %arg13[%c0_53, %c0_54], %271 {strides = array<i32>} : memref<8x128xf32, #tpu.memory_space<vmem>>, vector<8x128xf32>,
    %c0_i32_55 = arith.constant 0 : i32
    %274 = arith.cmpi eq, %arg1, %c0_i32_55 : i32
    %275 = arith.extui %274 : i1 to i32
    %c0_i32_56 = arith.constant 0 : i32
    %276 = arith.cmpi ne, %275, %c0_i32_56 : i32
    scf.if %276 {
      %c0_57 = arith.constant 0 : index
      %c0_58 = arith.constant 0 : index
      %277 = vector.load %arg7[%c0_57, %c0_58] : memref<128x128xf32, #tpu.memory_space<vmem>>, vector<128x128xf32>
      %cst_59 = arith.constant dense<0.000000e+00> : vector<8x128xf32>
      %278 = tpu.matmul %268, %277, %cst_59 {dimension_numbers = #tpu.dot_dimension_numbers<[1], [0], [0], [1], [0, 0, 1, 1], [], []>} : vector<8x128xf32>, vector<128x128xf32>, vector<8x128xf32> -> vector<8x128xf32>
      %c0_60 = arith.constant 0 : index
      %c0_61 = arith.constant 0 : index
      %279 = vector.load %arg8[%c0_60, %c0_61] : memref<1x128xf32, #tpu.memory_space<vmem>>, vector<1x128xf32>
      %280 = vector.broadcast %279 : vector<1x128xf32> to vector<8x128xf32>
      %281 = arith.addf %278, %280 : vector<8x128xf32>
      %c0_62 = arith.constant 0 : index
      %c0_63 = arith.constant 0 : index
      %282 = vector.load %arg10[%c0_62, %c0_63] : memref<8x128xf32, #tpu.memory_space<vmem>>, vector<8x128xf32>
      tpu.vector_store %arg10[%c0_62, %c0_63], %281 {strides = array<i32>} : memref<8x128xf32, #tpu.memory_space<vmem>>, vector<8x128xf32>,
      %cst_64 = arith.constant dense<0xFF800000> : vector<8xf32>
      %283 = vector.multi_reduction <maximumf>, %281, %cst_64 [1] : vector<8x128xf32> to vector<8xf32>
      %284 = vector.shape_cast %283 : vector<8xf32> to vector<8x1xf32>
      %285 = vector.broadcast %284 : vector<8x1xf32> to vector<8x128xf32>
      %286 = arith.subf %281, %285 : vector<8x128xf32>
      %287 = math.exp %286 : vector<8x128xf32>
      %cst_65 = arith.constant dense<0.000000e+00> : vector<8xf32>
      %288 = vector.multi_reduction <add>, %287, %cst_65 [1] : vector<8x128xf32> to vector<8xf32>
      %289 = vector.shape_cast %288 : vector<8xf32> to vector<8x1xf32>
      %290 = math.log %289 : vector<8x1xf32>
      %291 = arith.addf %284, %290 : vector<8x1xf32>
      %292 = vector.broadcast %291 : vector<8x1xf32> to vector<8x128xf32>
      %293 = arith.subf %281, %292 : vector<8x128xf32>
      %c0_66 = arith.constant 0 : index
      %c0_67 = arith.constant 0 : index
      %294 = vector.load %arg9[%c0_66, %c0_67] : memref<8x128xf32, #tpu.memory_space<vmem>>, vector<8x128xf32>
      %295 = arith.mulf %294, %293 : vector<8x128xf32>
      %cst_68 = arith.constant 0.000000e+00 : f32
      %296 = vector.broadcast %cst_68 : f32 to vector<8x128xf32>
      %297 = arith.subf %296, %295 : vector<8x128xf32>
      %c0_69 = arith.constant 0 : index
      %c0_70 = arith.constant 0 : index
      %298 = vector.load %arg11[%c0_69, %c0_70] : memref<8x128xf32, #tpu.memory_space<vmem>>, vector<8x128xf32>
      tpu.vector_store %arg11[%c0_69, %c0_70], %297 {strides = array<i32>} : memref<8x128xf32, #tpu.memory_space<vmem>>, vector<8x128xf32>,
    } else {
    }
    return
  }
  func.func @transform_0(%arg0: i32, %arg1: i32) -> (i32, i32) {
    %c0_i32 = arith.constant 0 : i32
    %c0_i32_0 = arith.constant 0 : i32
    return %arg0, %c0_i32 : i32, i32
  }
  func.func @transform_1(%arg0: i32, %arg1: i32) -> (i32, i32, i32) {
    %c0_i32 = arith.constant 0 : i32
    %c0_i32_0 = arith.constant 0 : i32
    return %arg0, %arg1, %c0_i32 : i32, i32, i32
  }
  func.func @transform_2(%arg0: i32, %arg1: i32) -> (i32, i32) {
    %c0_i32 = arith.constant 0 : i32
    %c0_i32_0 = arith.constant 0 : i32
    %c0_i32_1 = arith.constant 0 : i32
    return %c0_i32, %c0_i32_0 : i32, i32
  }
  func.func @transform_3(%arg0: i32, %arg1: i32) -> (i32, i32) {
    %c0_i32 = arith.constant 0 : i32
    %c0_i32_0 = arith.constant 0 : i32
    %c0_i32_1 = arith.constant 0 : i32
    return %c0_i32, %c0_i32_0 : i32, i32
  }
  func.func @transform_4(%arg0: i32, %arg1: i32) -> (i32, i32) {
    %c0_i32 = arith.constant 0 : i32
    %c0_i32_0 = arith.constant 0 : i32
    %c0_i32_1 = arith.constant 0 : i32
    return %c0_i32, %c0_i32_0 : i32, i32
  }
  func.func @transform_5(%arg0: i32, %arg1: i32) -> (i32, i32) {
    %c0_i32 = arith.constant 0 : i32
    %c0_i32_0 = arith.constant 0 : i32
    %c0_i32_1 = arith.constant 0 : i32
    return %c0_i32, %c0_i32_0 : i32, i32
  }
  func.func @transform_6(%arg0: i32, %arg1: i32) -> (i32, i32) {
    %c0_i32 = arith.constant 0 : i32
    %c0_i32_0 = arith.constant 0 : i32
    %c0_i32_1 = arith.constant 0 : i32
    return %c0_i32, %c0_i32_0 : i32, i32
  }
  func.func @transform_7(%arg0: i32, %arg1: i32) -> (i32, i32) {
    %c0_i32 = arith.constant 0 : i32
    %c0_i32_0 = arith.constant 0 : i32
    return %arg0, %c0_i32 : i32, i32
  }
  func.func @transform_8(%arg0: i32, %arg1: i32) -> (i32, i32) {
    %c0_i32 = arith.constant 0 : i32
    %c0_i32_0 = arith.constant 0 : i32
    return %arg0, %c0_i32 : i32, i32
  }
  func.func @transform_9(%arg0: i32, %arg1: i32) -> (i32, i32) {
    %c0_i32 = arith.constant 0 : i32
    %c0_i32_0 = arith.constant 0 : i32
    return %arg0, %c0_i32 : i32, i32
  }
}

</mosaic_0001>

<llo_original>
// kernel: tpu_custom_call.1
$region0: #{tpu_custom_call.1}
  #allocation0 [shape = 'u32[]', space=smem, size = 0x4, offset = 0x4, fixed_abs, tag = 'smem constant byte address 0x4 - core index']
  #allocation1 [shape = 'u32[72,128]{1,0:T(1,128)}', space=vmem, size = 0x9000, scoped, tag = 'internal scratch']
  #allocation2 [shape = 'f32[8,128]{1,0:T(8,128)}', space=vmem, size = 0x1000, scoped, tag = 'scratch operand']
  #allocation3 [shape = 'f32[8,128]{1,0:T(8,128)}', space=vmem, size = 0x1000, scoped, tag = 'scratch operand']
  #allocation4 [shape = 'f32[64,512]{1,0:T(8,128)}', space=vmem, size = 0x20000, scoped, tag = 'scratch operand']
  %s0 = inlined_call_operand.vmem [shape: s32[8,1], index: 0, kind: input, shape index: {}]
  %s1 = inlined_call_operand.hbm [shape: bf16[1,64,128], index: 1, kind: input, shape index: {}]
  %s2 = inlined_call_operand.hbm [shape: bf16[128,512], index: 2, kind: input, shape index: {}]
  %s3 = inlined_call_operand.hbm [shape: bf16[128,512], index: 3, kind: input, shape index: {}]
  %s4 = inlined_call_operand.vmem [shape: f32[1,512], index: 4, kind: input, shape index: {}]
  %s5 = inlined_call_operand.hbm [shape: f32[128,128], index: 5, kind: input, shape index: {}]
  %s6 = inlined_call_operand.vmem [shape: f32[1,128], index: 6, kind: input, shape index: {}]
  %s7 = inlined_call_operand.vmem [shape: f32[8,128], index: 7, kind: input, shape index: {}]
  %s8 = inlined_call_operand.hbm [shape: f32[8,128], index: 8, kind: output, shape index: {0}]
  %s9 = inlined_call_operand.hbm [shape: f32[8,128], index: 9, kind: output, shape index: {1}]
  %10 = xla_tuple %s8, %s9
  %s11 = sld [smem:[#allocation0]]
  $region74: #{tpu_custom_call.1} parent=0
    _
  %s13 = ssub.s32 1, %s11
  %s14 = scalar_select 0, %s13, %s11
  $region1: #{tpu_custom_call.1} parent=0
    #allocation5 [shape = 'u8[16384]{0}', space=vmem, size = 0x4000, scoped, tag = 'input window, operand 1, single buffered']
    #allocation6 [shape = 's32[1]{0}', space=sflag, size = 0x4, scoped, tag = 'scoped memory for tpu_custom_call.1']
    #allocation7 [shape = 's32[1]{0}', space=sflag, size = 0x4, scoped, tag = 'scoped memory for tpu_custom_call.1']
    #allocation8 [shape = 'u8[131072]{0}', space=vmem, size = 0x20000, scoped, tag = 'input window, operand 2, single buffered']
    #allocation9 [shape = 's32[1]{0}', space=sflag, size = 0x4, scoped, tag = 'scoped memory for tpu_custom_call.1']
    #allocation10 [shape = 'u8[131072]{0}', space=vmem, size = 0x20000, scoped, tag = 'input window, operand 3, single buffered']
    #allocation11 [shape = 'u8[65536]{0}', space=vmem, size = 0x10000, scoped, tag = 'input window, operand 5, single buffered']
    #allocation12 [shape = 's32[1]{0}', space=sflag, size = 0x4, scoped, tag = 'scoped memory for tpu_custom_call.1']
    #allocation13 [shape = 'u8[4096]{0}', space=vmem, size = 0x1000, scoped, tag = 'output window, operand 0, single buffered']
    #allocation14 [shape = 'u8[4096]{0}', space=vmem, size = 0x1000, scoped, tag = 'output window, operand 1, single buffered']
    #allocation15 [shape = 's32[1]{0}', space=sflag, size = 0x4, scoped, tag = 'scoped memory for tpu_custom_call.1']
    %15 = vsyncpa [#allocation6], 0
    %16 = vsyncpa [#allocation9], 0
    %17 = vsyncpa [#allocation12], 0
    %18 = vsyncpa [#allocation7], 0
    %19 = vsyncpa [#allocation15], 0
    // Predicated region
    $region2: #{tpu_custom_call.1} parent=1 // pred_check
      _
    $region3: #{tpu_custom_call.1} parent=1 // pred_check_branch
      %21 = sbr.rel (0) target = $region5
    $region4: #{tpu_custom_call.1} parent=1 // pred_region
      _
    $region5: #{tpu_custom_call.1} parent=1 // pred_fallthru
      _
    // Predicated region
    $region6: #{tpu_custom_call.1} parent=1 // pred_check
      _
    $region7: #{tpu_custom_call.1} parent=1 // pred_check_branch
      %23 = sbr.rel (0) target = $region9
    $region8: #{tpu_custom_call.1} parent=1 // pred_region
      %25 = vsyncadd [#allocation6], 0
      %s26 = sshll.u32 %s1, 4
      %s27 = int_to_ptr.hbm [resolvable:$true] %s26
      %s28 = sshll.u32 [#allocation5], 4
      %s29 = int_to_ptr.vmem [resolvable:$true] %s28
      %34 = dma.hbm_to_vmem [thread:$0]  %s27, 512, %s29, [#allocation6], 64, 64, 4
    $region9: #{tpu_custom_call.1} parent=1 // pred_fallthru
      _
    // Predicated region
    $region10: #{tpu_custom_call.1} parent=1 // pred_check
      _
    $region11: #{tpu_custom_call.1} parent=1 // pred_check_branch
      %36 = sbr.rel (0) target = $region13
    $region12: #{tpu_custom_call.1} parent=1 // pred_region
      %38 = vsyncadd [#allocation9], 0
      %s39 = sshll.u32 %s2, 4
      %s40 = int_to_ptr.hbm [resolvable:$true] %s39
      %s41 = sshll.u32 [#allocation8], 4
      %s42 = int_to_ptr.vmem [resolvable:$true] %s41
      %47 = dma.hbm_to_vmem [thread:$0]  %s40, 4096, %s42, [#allocation9], 256, 256, 16
    $region13: #{tpu_custom_call.1} parent=1 // pred_fallthru
      _
    // Predicated region
    $region14: #{tpu_custom_call.1} parent=1 // pred_check
      _
    $region15: #{tpu_custom_call.1} parent=1 // pred_check_branch
      %49 = sbr.rel (0) target = $region17
    $region16: #{tpu_custom_call.1} parent=1 // pred_region
      %51 = vsyncadd [#allocation9], 0
      %s52 = sshll.u32 %s3, 4
      %s53 = int_to_ptr.hbm [resolvable:$true] %s52
      %s54 = sshll.u32 [#allocation10], 4
      %s55 = int_to_ptr.vmem [resolvable:$true] %s54
      %60 = dma.hbm_to_vmem [thread:$0]  %s53, 4096, %s55, [#allocation9], 256, 256, 16
    $region17: #{tpu_custom_call.1} parent=1 // pred_fallthru
      _
    // Predicated region
    $region18: #{tpu_custom_call.1} parent=1 // pred_check
      _
    $region19: #{tpu_custom_call.1} parent=1 // pred_check_branch
      %62 = sbr.rel (0) target = $region21
    $region20: #{tpu_custom_call.1} parent=1 // pred_region
      _
    $region21: #{tpu_custom_call.1} parent=1 // pred_fallthru
      _
    // Predicated region
    $region22: #{tpu_custom_call.1} parent=1 // pred_check
      _
    $region23: #{tpu_custom_call.1} parent=1 // pred_check_branch
      %64 = sbr.rel (0) target = $region25
    $region24: #{tpu_custom_call.1} parent=1 // pred_region
      %66 = vsyncadd [#allocation12], 0
      %s67 = sshll.u32 %s5, 4
      %s68 = int_to_ptr.hbm [resolvable:$true] %s67
      %s69 = sshll.u32 [#allocation11], 4
      %s70 = int_to_ptr.vmem [resolvable:$true] %s69
      %75 = dma.hbm_to_vmem [thread:$0]  %s68, 2048, %s70, [#allocation12], 128, 128, 8
    $region25: #{tpu_custom_call.1} parent=1 // pred_fallthru
      _
    // Predicated region
    $region26: #{tpu_custom_call.1} parent=1 // pred_check
      _
    $region27: #{tpu_custom_call.1} parent=1 // pred_check_branch
      %77 = sbr.rel (0) target = $region29
    $region28: #{tpu_custom_call.1} parent=1 // pred_region
      _
    $region29: #{tpu_custom_call.1} parent=1 // pred_fallthru
      _
    // Predicated region
    $region30: #{tpu_custom_call.1} parent=1 // pred_check
      _
    $region31: #{tpu_custom_call.1} parent=1 // pred_check_branch
      %79 = sbr.rel (0) target = $region33
    $region32: #{tpu_custom_call.1} parent=1 // pred_region
      _
    $region33: #{tpu_custom_call.1} parent=1 // pred_fallthru
      _
    // Predicated region
    $region34: #{tpu_custom_call.1} parent=1 // pred_check
      _
    $region35: #{tpu_custom_call.1} parent=1 // pred_check_branch
      %81 = sbr.rel (0) target = $region37
    $region36: #{tpu_custom_call.1} parent=1 // pred_region
      %83 = dma.done [#allocation6], 512
    $region37: #{tpu_custom_call.1} parent=1 // pred_fallthru
      _
    // Predicated region
    $region38: #{tpu_custom_call.1} parent=1 // pred_check
      _
    $region39: #{tpu_custom_call.1} parent=1 // pred_check_branch
      %85 = sbr.rel (0) target = $region41
    $region40: #{tpu_custom_call.1} parent=1 // pred_region
      %87 = dma.done [#allocation9], 4096
    $region41: #{tpu_custom_call.1} parent=1 // pred_fallthru
      _
    // Predicated region
    $region42: #{tpu_custom_call.1} parent=1 // pred_check
      _
    $region43: #{tpu_custom_call.1} parent=1 // pred_check_branch
      %89 = sbr.rel (0) target = $region45
    $region44: #{tpu_custom_call.1} parent=1 // pred_region
      %91 = dma.done [#allocation9], 4096
    $region45: #{tpu_custom_call.1} parent=1 // pred_fallthru
      _
    // Predicated region
    $region46: #{tpu_custom_call.1} parent=1 // pred_check
      _
    $region47: #{tpu_custom_call.1} parent=1 // pred_check_branch
      %93 = sbr.rel (0) target = $region49
    $region48: #{tpu_custom_call.1} parent=1 // pred_region
      %95 = dma.done [#allocation12], 2048
    $region49: #{tpu_custom_call.1} parent=1 // pred_fallthru
      _
    %p96 = scmp.eq.s32.totalorder 0, 0
    // Predicated region
    $region50: #{tpu_custom_call.1} parent=1 // pred_check
      %p97 = pneg %p96
    $region51: #{tpu_custom_call.1} parent=1 // pred_check_branch
      %99 = sbr.rel (%p97) target = $region53
    $region52: #{tpu_custom_call.1} parent=1 // pred_region
      %100 = vst [vmem:[#allocation2] sm:$0xff] 0.0
      %101 = vst [vmem:[#allocation3] sm:$0xff] 0.0
    $region53: #{tpu_custom_call.1} parent=1 // pred_fallthru
      _
    %v102 = vld [vmem:[#allocation5] sm:$0xf]
    %v103 = vld [vmem:[#allocation5 + $0x4] sm:$0xf]
    %v104 = vld [vmem:[#allocation5 + $0x8] sm:$0xf]
    %v105 = vld [vmem:[#allocation5 + $0xc] sm:$0xf]
    %v106 = vld [vmem:[#allocation5 + $0x10] sm:$0xf]
    %v107 = vld [vmem:[#allocation5 + $0x14] sm:$0xf]
    %v108 = vld [vmem:[#allocation5 + $0x18] sm:$0xf]
    %v109 = vld [vmem:[#allocation5 + $0x1c] sm:$0xf]
    %v110 = vld [vmem:[#allocation8] sm:$0xff]
    %v111 = vld [vmem:[#allocation8 + $0x8] sm:$0xff]
    %v112 = vld [vmem:[#allocation8 + $0x10] sm:$0xff]
    %v113 = vld [vmem:[#allocation8 + $0x18] sm:$0xff]
    %v114 = vld [vmem:[#allocation8 + $0x20] sm:$0xff]
    %v115 = vld [vmem:[#allocation8 + $0x28] sm:$0xff]
    %v116 = vld [vmem:[#allocation8 + $0x30] sm:$0xff]
    %v117 = vld [vmem:[#allocation8 + $0x38] sm:$0xff]
    %v118 = vld [vmem:[#allocation8 + $0x40] sm:$0xff]
    %v119 = vld [vmem:[#allocation8 + $0x48] sm:$0xff]
    %v120 = vld [vmem:[#allocation8 + $0x50] sm:$0xff]
    %v121 = vld [vmem:[#allocation8 + $0x58] sm:$0xff]
    %v122 = vld [vmem:[#allocation8 + $0x60] sm:$0xff]
    %v123 = vld [vmem:[#allocation8 + $0x68] sm:$0xff]
    %v124 = vld [vmem:[#allocation8 + $0x70] sm:$0xff]
    %v125 = vld [vmem:[#allocation8 + $0x78] sm:$0xff]
    %v126 = vld [vmem:[#allocation8 + $0x80] sm:$0xff]
    %v127 = vld [vmem:[#allocation8 + $0x88] sm:$0xff]
    %v128 = vld [vmem:[#allocation8 + $0x90] sm:$0xff]
    %v129 = vld [vmem:[#allocation8 + $0x98] sm:$0xff]
    %v130 = vld [vmem:[#allocation8 + $0xa0] sm:$0xff]
    %v131 = vld [vmem:[#allocation8 + $0xa8] sm:$0xff]
    %v132 = vld [vmem:[#allocation8 + $0xb0] sm:$0xff]
    %v133 = vld [vmem:[#allocation8 + $0xb8] sm:$0xff]
    %v134 = vld [vmem:[#allocation8 + $0xc0] sm:$0xff]
    %v135 = vld [vmem:[#allocation8 + $0xc8] sm:$0xff]
    %v136 = vld [vmem:[#allocation8 + $0xd0] sm:$0xff]
    %v137 = vld [vmem:[#allocation8 + $0xd8] sm:$0xff]
    %v138 = vld [vmem:[#allocation8 + $0xe0] sm:$0xff]
    %v139 = vld [vmem:[#allocation8 + $0xe8] sm:$0xff]
    %v140 = vld [vmem:[#allocation8 + $0xf0] sm:$0xff]
    %v141 = vld [vmem:[#allocation8 + $0xf8] sm:$0xff]
    %v142 = vld [vmem:[%s4] sm:$0xf]
    %v144 = vperm.slane %v142, 0
    %v145 = vperm.slane %v142, 1
    %v146 = vperm.slane %v142, 2
    %v147 = vperm.slane %v142, 3
    %v160 = vunpack.c.l.b16 %v102
    %v161 = vunpack.c.l.b16 %v103
    %v162 = vunpack.c.l.b16 %v104
    %v163 = vunpack.c.l.b16 %v105
    %v164 = vunpack.c.l.b16 %v106
    %v165 = vunpack.c.l.b16 %v107
    %v166 = vunpack.c.l.b16 %v108
    %v167 = vunpack.c.l.b16 %v109
    %v168 = vpack.c.b16 %v161, %v160
    %v169 = vpack.c.b16 %v163, %v162
    %v170 = vpack.c.b16 %v165, %v164
    %v171 = vpack.c.b16 %v167, %v166
    %v208 = vunpack.c.l.b16 %v110
    %v209 = vunpack.c.h.b16 %v110
    %v210 = vunpack.c.l.b16 %v111
    %v211 = vunpack.c.h.b16 %v111
    %v212 = vunpack.c.l.b16 %v112
    %v213 = vunpack.c.h.b16 %v112
    %v214 = vunpack.c.l.b16 %v113
    %v215 = vunpack.c.h.b16 %v113
    %v216 = vunpack.c.l.b16 %v114
    %v217 = vunpack.c.h.b16 %v114
    %v218 = vunpack.c.l.b16 %v115
    %v219 = vunpack.c.h.b16 %v115
    %v220 = vunpack.c.l.b16 %v116
    %v221 = vunpack.c.h.b16 %v116
    %v222 = vunpack.c.l.b16 %v117
    %v223 = vunpack.c.h.b16 %v117
    %v224 = vunpack.c.l.b16 %v118
    %v225 = vunpack.c.h.b16 %v118
    %v226 = vunpack.c.l.b16 %v119
    %v227 = vunpack.c.h.b16 %v119
    %v228 = vunpack.c.l.b16 %v120
    %v229 = vunpack.c.h.b16 %v120
    %v230 = vunpack.c.l.b16 %v121
    %v231 = vunpack.c.h.b16 %v121
    %v232 = vunpack.c.l.b16 %v122
    %v233 = vunpack.c.h.b16 %v122
    %v234 = vunpack.c.l.b16 %v123
    %v235 = vunpack.c.h.b16 %v123
    %v236 = vunpack.c.l.b16 %v124
    %v237 = vunpack.c.h.b16 %v124
    %v238 = vunpack.c.l.b16 %v125
    %v239 = vunpack.c.h.b16 %v125
    %v240 = vunpack.c.l.b16 %v126
    %v241 = vunpack.c.h.b16 %v126
    %v242 = vunpack.c.l.b16 %v127
    %v243 = vunpack.c.h.b16 %v127
    %v244 = vunpack.c.l.b16 %v128
    %v245 = vunpack.c.h.b16 %v128
    %v246 = vunpack.c.l.b16 %v129
    %v247 = vunpack.c.h.b16 %v129
    %v248 = vunpack.c.l.b16 %v130
    %v249 = vunpack.c.h.b16 %v130
    %v250 = vunpack.c.l.b16 %v131
    %v251 = vunpack.c.h.b16 %v131
    %v252 = vunpack.c.l.b16 %v132
    %v253 = vunpack.c.h.b16 %v132
    %v254 = vunpack.c.l.b16 %v133
    %v255 = vunpack.c.h.b16 %v133
    %v256 = vunpack.c.l.b16 %v134
    %v257 = vunpack.c.h.b16 %v134
    %v258 = vunpack.c.l.b16 %v135
    %v259 = vunpack.c.h.b16 %v135
    %v260 = vunpack.c.l.b16 %v136
    %v261 = vunpack.c.h.b16 %v136
    %v262 = vunpack.c.l.b16 %v137
    %v263 = vunpack.c.h.b16 %v137
    %v264 = vunpack.c.l.b16 %v138
    %v265 = vunpack.c.h.b16 %v138
    %v266 = vunpack.c.l.b16 %v139
    %v267 = vunpack.c.h.b16 %v139
    %v268 = vunpack.c.l.b16 %v140
    %v269 = vunpack.c.h.b16 %v140
    %v270 = vunpack.c.l.b16 %v141
    %v271 = vunpack.c.h.b16 %v141
    %v272 = vpack.c.b16 %v212, %v208
    %v273 = vpack.c.b16 %v213, %v209
    %v274 = vpack.c.b16 %v214, %v210
    %v275 = vpack.c.b16 %v215, %v211
    %v276 = vpack.c.b16 %v220, %v216
    %v277 = vpack.c.b16 %v221, %v217
    %v278 = vpack.c.b16 %v222, %v218
    %v279 = vpack.c.b16 %v223, %v219
    %v280 = vpack.c.b16 %v228, %v224
    %v281 = vpack.c.b16 %v229, %v225
    %v282 = vpack.c.b16 %v230, %v226
    %v283 = vpack.c.b16 %v231, %v227
    %v284 = vpack.c.b16 %v236, %v232
    %v285 = vpack.c.b16 %v237, %v233
    %v286 = vpack.c.b16 %v238, %v234
    %v287 = vpack.c.b16 %v239, %v235
    %v288 = vpack.c.b16 %v244, %v240
    %v289 = vpack.c.b16 %v245, %v241
    %v290 = vpack.c.b16 %v246, %v242
    %v291 = vpack.c.b16 %v247, %v243
    %v292 = vpack.c.b16 %v252, %v248
    %v293 = vpack.c.b16 %v253, %v249
    %v294 = vpack.c.b16 %v254, %v250
    %v295 = vpack.c.b16 %v255, %v251
    %v296 = vpack.c.b16 %v260, %v256
    %v297 = vpack.c.b16 %v261, %v257
    %v298 = vpack.c.b16 %v262, %v258
    %v299 = vpack.c.b16 %v263, %v259
    %v300 = vpack.c.b16 %v268, %v264
    %v301 = vpack.c.b16 %v269, %v265
    %v302 = vpack.c.b16 %v270, %v266
    %v303 = vpack.c.b16 %v271, %v267
    %336 = vmatpush.bf16.msra.mxu0 %v300
    %337 = vmatpush.bf16.msra.mxu0 %v296
    %338 = vmatpush.bf16.msra.mxu0 %v292
    %339 = vmatpush.bf16.msra.mxu0 %v288
    %340 = vmatpush.bf16.msra.mxu0 %v284
    %341 = vmatpush.bf16.msra.mxu0 %v280
    %342 = vmatpush.bf16.msra.mxu0 %v276
    %343 = vmatpush.bf16.msra.mxu0 %v272
    %344 = vmatmul.bf16.gmra.mxu0 %v168
    %v345 = vpop.f32.mrf.mxu0
    %v346 = vadd.f32 %v144, %v345
    %v347 = vpop.f32.mrf.mxu0
    %v348 = vadd.f32 %v144, %v347
    %349 = vmatmul.bf16.gmra.mxu0 %v169
    %v350 = vpop.f32.mrf.mxu0
    %v351 = vadd.f32 %v144, %v350
    %v352 = vpop.f32.mrf.mxu0
    %v353 = vadd.f32 %v144, %v352
    %354 = vmatmul.bf16.gmra.mxu0 %v170
    %v355 = vpop.f32.mrf.mxu0
    %v356 = vadd.f32 %v144, %v355
    %v357 = vpop.f32.mrf.mxu0
    %v358 = vadd.f32 %v144, %v357
    %359 = vmatmul.bf16.gmra.mxu0 %v171
    %v360 = vpop.f32.mrf.mxu0
    %v361 = vadd.f32 %v144, %v360
    %v362 = vpop.f32.mrf.mxu0
    %v363 = vadd.f32 %v144, %v362
    %364 = vdwg.mxu0
    %365 = vmatpush.bf16.msra.mxu0 %v301
    %366 = vmatpush.bf16.msra.mxu0 %v297
    %367 = vmatpush.bf16.msra.mxu0 %v293
    %368 = vmatpush.bf16.msra.mxu0 %v289
    %369 = vmatpush.bf16.msra.mxu0 %v285
    %370 = vmatpush.bf16.msra.mxu0 %v281
    %371 = vmatpush.bf16.msra.mxu0 %v277
    %372 = vmatpush.bf16.msra.mxu0 %v273
    %373 = vmatmul.bf16.gmra.mxu0 %v168
    %v374 = vpop.f32.mrf.mxu0
    %v375 = vadd.f32 %v145, %v374
    %v376 = vpop.f32.mrf.mxu0
    %v377 = vadd.f32 %v145, %v376
    %378 = vmatmul.bf16.gmra.mxu0 %v169
    %v379 = vpop.f32.mrf.mxu0
    %v380 = vadd.f32 %v145, %v379
    %v381 = vpop.f32.mrf.mxu0
    %v382 = vadd.f32 %v145, %v381
    %383 = vmatmul.bf16.gmra.mxu0 %v170
    %v384 = vpop.f32.mrf.mxu0
    %v385 = vadd.f32 %v145, %v384
    %v386 = vpop.f32.mrf.mxu0
    %v387 = vadd.f32 %v145, %v386
    %388 = vmatmul.bf16.gmra.mxu0 %v171
    %v389 = vpop.f32.mrf.mxu0
    %v390 = vadd.f32 %v145, %v389
    %v391 = vpop.f32.mrf.mxu0
    %v392 = vadd.f32 %v145, %v391
    %393 = vdwg.mxu0
    %394 = vmatpush.bf16.msra.mxu0 %v302
    %395 = vmatpush.bf16.msra.mxu0 %v298
    %396 = vmatpush.bf16.msra.mxu0 %v294
    %397 = vmatpush.bf16.msra.mxu0 %v290
    %398 = vmatpush.bf16.msra.mxu0 %v286
    %399 = vmatpush.bf16.msra.mxu0 %v282
    %400 = vmatpush.bf16.msra.mxu0 %v278
    %401 = vmatpush.bf16.msra.mxu0 %v274
    %402 = vmatmul.bf16.gmra.mxu0 %v168
    %v403 = vpop.f32.mrf.mxu0
    %v404 = vadd.f32 %v146, %v403
    %v405 = vpop.f32.mrf.mxu0
    %v406 = vadd.f32 %v146, %v405
    %407 = vmatmul.bf16.gmra.mxu0 %v169
    %v408 = vpop.f32.mrf.mxu0
    %v409 = vadd.f32 %v146, %v408
    %v410 = vpop.f32.mrf.mxu0
    %v411 = vadd.f32 %v146, %v410
    %412 = vmatmul.bf16.gmra.mxu0 %v170
    %v413 = vpop.f32.mrf.mxu0
    %v414 = vadd.f32 %v146, %v413
    %v415 = vpop.f32.mrf.mxu0
    %v416 = vadd.f32 %v146, %v415
    %417 = vmatmul.bf16.gmra.mxu0 %v171
    %v418 = vpop.f32.mrf.mxu0
    %v419 = vadd.f32 %v146, %v418
    %v420 = vpop.f32.mrf.mxu0
    %v421 = vadd.f32 %v146, %v420
    %422 = vdwg.mxu0
    %423 = vmatpush.bf16.msra.mxu0 %v303
    %424 = vmatpush.bf16.msra.mxu0 %v299
    %425 = vmatpush.bf16.msra.mxu0 %v295
    %426 = vmatpush.bf16.msra.mxu0 %v291
    %427 = vmatpush.bf16.msra.mxu0 %v287
    %428 = vmatpush.bf16.msra.mxu0 %v283
    %429 = vmatpush.bf16.msra.mxu0 %v279
    %430 = vmatpush.bf16.msra.mxu0 %v275
    %431 = vmatmul.bf16.gmra.mxu0 %v168
    %v432 = vpop.f32.mrf.mxu0
    %v433 = vadd.f32 %v147, %v432
    %v434 = vpop.f32.mrf.mxu0
    %v435 = vadd.f32 %v147, %v434
    %436 = vmatmul.bf16.gmra.mxu0 %v169
    %v437 = vpop.f32.mrf.mxu0
    %v438 = vadd.f32 %v147, %v437
    %v439 = vpop.f32.mrf.mxu0
    %v440 = vadd.f32 %v147, %v439
    %441 = vmatmul.bf16.gmra.mxu0 %v170
    %v442 = vpop.f32.mrf.mxu0
    %v443 = vadd.f32 %v147, %v442
    %v444 = vpop.f32.mrf.mxu0
    %v445 = vadd.f32 %v147, %v444
    %446 = vmatmul.bf16.gmra.mxu0 %v171
    %v447 = vpop.f32.mrf.mxu0
    %v448 = vadd.f32 %v147, %v447
    %v449 = vpop.f32.mrf.mxu0
    %v450 = vadd.f32 %v147, %v449
    %451 = vdwg.mxu0
    %452 = vst [vmem:[#allocation4] sm:$0xff] %v346
    %453 = vst [vmem:[#allocation4 + $0x8] sm:$0xff] %v375
    %454 = vst [vmem:[#allocation4 + $0x10] sm:$0xff] %v404
    %455 = vst [vmem:[#allocation4 + $0x18] sm:$0xff] %v433
    %456 = vst [vmem:[#allocation4 + $0x20] sm:$0xff] %v348
    %457 = vst [vmem:[#allocation4 + $0x28] sm:$0xff] %v377
    %458 = vst [vmem:[#allocation4 + $0x30] sm:$0xff] %v406
    %459 = vst [vmem:[#allocation4 + $0x38] sm:$0xff] %v435
    %460 = vst [vmem:[#allocation4 + $0x40] sm:$0xff] %v351
    %461 = vst [vmem:[#allocation4 + $0x48] sm:$0xff] %v380
    %462 = vst [vmem:[#allocation4 + $0x50] sm:$0xff] %v409
    %463 = vst [vmem:[#allocation4 + $0x58] sm:$0xff] %v438
    %464 = vst [vmem:[#allocation4 + $0x60] sm:$0xff] %v353
    %465 = vst [vmem:[#allocation4 + $0x68] sm:$0xff] %v382
    %466 = vst [vmem:[#allocation4 + $0x70] sm:$0xff] %v411
    %467 = vst [vmem:[#allocation4 + $0x78] sm:$0xff] %v440
    %468 = vst [vmem:[#allocation4 + $0x80] sm:$0xff] %v356
    %469 = vst [vmem:[#allocation4 + $0x88] sm:$0xff] %v385
    %470 = vst [vmem:[#allocation4 + $0x90] sm:$0xff] %v414
    %471 = vst [vmem:[#allocation4 + $0x98] sm:$0xff] %v443
    %472 = vst [vmem:[#allocation4 + $0xa0] sm:$0xff] %v358
    %473 = vst [vmem:[#allocation4 + $0xa8] sm:$0xff] %v387
    %474 = vst [vmem:[#allocation4 + $0xb0] sm:$0xff] %v416
    %475 = vst [vmem:[#allocation4 + $0xb8] sm:$0xff] %v445
    %476 = vst [vmem:[#allocation4 + $0xc0] sm:$0xff] %v361
    %477 = vst [vmem:[#allocation4 + $0xc8] sm:$0xff] %v390
    %478 = vst [vmem:[#allocation4 + $0xd0] sm:$0xff] %v419
    %479 = vst [vmem:[#allocation4 + $0xd8] sm:$0xff] %v448
    %480 = vst [vmem:[#allocation4 + $0xe0] sm:$0xff] %v363
    %481 = vst [vmem:[#allocation4 + $0xe8] sm:$0xff] %v392
    %482 = vst [vmem:[#allocation4 + $0xf0] sm:$0xff] %v421
    %483 = vst [vmem:[#allocation4 + $0xf8] sm:$0xff] %v450
    %v484 = vld [vmem:[#allocation10] sm:$0xff]
    %v485 = vld [vmem:[#allocation10 + $0x8] sm:$0xff]
    %v486 = vld [vmem:[#allocation10 + $0x10] sm:$0xff]
    %v487 = vld [vmem:[#allocation10 + $0x18] sm:$0xff]
    %v488 = vld [vmem:[#allocation10 + $0x20] sm:$0xff]
    %v489 = vld [vmem:[#allocation10 + $0x28] sm:$0xff]
    %v490 = vld [vmem:[#allocation10 + $0x30] sm:$0xff]
    %v491 = vld [vmem:[#allocation10 + $0x38] sm:$0xff]
    %v492 = vld [vmem:[#allocation10 + $0x40] sm:$0xff]
    %v493 = vld [vmem:[#allocation10 + $0x48] sm:$0xff]
    %v494 = vld [vmem:[#allocation10 + $0x50] sm:$0xff]
    %v495 = vld [vmem:[#allocation10 + $0x58] sm:$0xff]
    %v496 = vld [vmem:[#allocation10 + $0x60] sm:$0xff]
    %v497 = vld [vmem:[#allocation10 + $0x68] sm:$0xff]
    %v498 = vld [vmem:[#allocation10 + $0x70] sm:$0xff]
    %v499 = vld [vmem:[#allocation10 + $0x78] sm:$0xff]
    %v500 = vld [vmem:[#allocation10 + $0x80] sm:$0xff]
    %v501 = vld [vmem:[#allocation10 + $0x88] sm:$0xff]
    %v502 = vld [vmem:[#allocation10 + $0x90] sm:$0xff]
    %v503 = vld [vmem:[#allocation10 + $0x98] sm:$0xff]
    %v504 = vld [vmem:[#allocation10 + $0xa0] sm:$0xff]
    %v505 = vld [vmem:[#allocation10 + $0xa8] sm:$0xff]
    %v506 = vld [vmem:[#allocation10 + $0xb0] sm:$0xff]
    %v507 = vld [vmem:[#allocation10 + $0xb8] sm:$0xff]
    %v508 = vld [vmem:[#allocation10 + $0xc0] sm:$0xff]
    %v509 = vld [vmem:[#allocation10 + $0xc8] sm:$0xff]
    %v510 = vld [vmem:[#allocation10 + $0xd0] sm:$0xff]
    %v511 = vld [vmem:[#allocation10 + $0xd8] sm:$0xff]
    %v512 = vld [vmem:[#allocation10 + $0xe0] sm:$0xff]
    %v513 = vld [vmem:[#allocation10 + $0xe8] sm:$0xff]
    %v514 = vld [vmem:[#allocation10 + $0xf0] sm:$0xff]
    %v515 = vld [vmem:[#allocation10 + $0xf8] sm:$0xff]
    %v516 = vld [vmem:[%s0] sm:$0xff]
    %s517 = smul.u32 0, 8
    %v518 = vld [vmem:[#allocation2] sm:$0xff]
    %v519 = vld [vmem:[#allocation3] sm:$0xff]
    %s520 = smul.u32 0, 4
    %s521 = smul.addr %s520, 8
    %s522 = scalar_lea.vmem [#allocation4], %s521
    %v523 = vld [vmem:[%s522] sm:$0xff]
    %v524 = vld [vmem:[%s522 + $0x8] sm:$0xff]
    %v525 = vld [vmem:[%s522 + $0x10] sm:$0xff]
    %v526 = vld [vmem:[%s522 + $0x18] sm:$0xff]
    %v527 = vpack.c.bf16 %v518, %v518
    %v560 = vunpack.c.l.b16 %v484
    %v561 = vunpack.c.h.b16 %v484
    %v562 = vunpack.c.l.b16 %v485
    %v563 = vunpack.c.h.b16 %v485
    %v564 = vunpack.c.l.b16 %v486
    %v565 = vunpack.c.h.b16 %v486
    %v566 = vunpack.c.l.b16 %v487
    %v567 = vunpack.c.h.b16 %v487
    %v568 = vunpack.c.l.b16 %v488
    %v569 = vunpack.c.h.b16 %v488
    %v570 = vunpack.c.l.b16 %v489
    %v571 = vunpack.c.h.b16 %v489
    %v572 = vunpack.c.l.b16 %v490
    %v573 = vunpack.c.h.b16 %v490
    %v574 = vunpack.c.l.b16 %v491
    %v575 = vunpack.c.h.b16 %v491
    %v576 = vunpack.c.l.b16 %v492
    %v577 = vunpack.c.h.b16 %v492
    %v578 = vunpack.c.l.b16 %v493
    %v579 = vunpack.c.h.b16 %v493
    %v580 = vunpack.c.l.b16 %v494
    %v581 = vunpack.c.h.b16 %v494
    %v582 = vunpack.c.l.b16 %v495
    %v583 = vunpack.c.h.b16 %v495
    %v584 = vunpack.c.l.b16 %v496
    %v585 = vunpack.c.h.b16 %v496
    %v586 = vunpack.c.l.b16 %v497
    %v587 = vunpack.c.h.b16 %v497
    %v588 = vunpack.c.l.b16 %v498
    %v589 = vunpack.c.h.b16 %v498
    %v590 = vunpack.c.l.b16 %v499
    %v591 = vunpack.c.h.b16 %v499
    %v592 = vunpack.c.l.b16 %v500
    %v593 = vunpack.c.h.b16 %v500
    %v594 = vunpack.c.l.b16 %v501
    %v595 = vunpack.c.h.b16 %v501
    %v596 = vunpack.c.l.b16 %v502
    %v597 = vunpack.c.h.b16 %v502
    %v598 = vunpack.c.l.b16 %v503
    %v599 = vunpack.c.h.b16 %v503
    %v600 = vunpack.c.l.b16 %v504
    %v601 = vunpack.c.h.b16 %v504
    %v602 = vunpack.c.l.b16 %v505
    %v603 = vunpack.c.h.b16 %v505
    %v604 = vunpack.c.l.b16 %v506
    %v605 = vunpack.c.h.b16 %v506
    %v606 = vunpack.c.l.b16 %v507
    %v607 = vunpack.c.h.b16 %v507
    %v608 = vunpack.c.l.b16 %v508
    %v609 = vunpack.c.h.b16 %v508
    %v610 = vunpack.c.l.b16 %v509
    %v611 = vunpack.c.h.b16 %v509
    %v612 = vunpack.c.l.b16 %v510
    %v613 = vunpack.c.h.b16 %v510
    %v614 = vunpack.c.l.b16 %v511
    %v615 = vunpack.c.h.b16 %v511
    %v616 = vunpack.c.l.b16 %v512
    %v617 = vunpack.c.h.b16 %v512
    %v618 = vunpack.c.l.b16 %v513
    %v619 = vunpack.c.h.b16 %v513
    %v620 = vunpack.c.l.b16 %v514
    %v621 = vunpack.c.h.b16 %v514
    %v622 = vunpack.c.l.b16 %v515
    %v623 = vunpack.c.h.b16 %v515
    %v624 = vpack.c.b16 %v564, %v560
    %v625 = vpack.c.b16 %v565, %v561
    %v626 = vpack.c.b16 %v566, %v562
    %v627 = vpack.c.b16 %v567, %v563
    %v628 = vpack.c.b16 %v572, %v568
    %v629 = vpack.c.b16 %v573, %v569
    %v630 = vpack.c.b16 %v574, %v570
    %v631 = vpack.c.b16 %v575, %v571
    %v632 = vpack.c.b16 %v580, %v576
    %v633 = vpack.c.b16 %v581, %v577
    %v634 = vpack.c.b16 %v582, %v578
    %v635 = vpack.c.b16 %v583, %v579
    %v636 = vpack.c.b16 %v588, %v584
    %v637 = vpack.c.b16 %v589, %v585
    %v638 = vpack.c.b16 %v590, %v586
    %v639 = vpack.c.b16 %v591, %v587
    %v640 = vpack.c.b16 %v596, %v592
    %v641 = vpack.c.b16 %v597, %v593
    %v642 = vpack.c.b16 %v598, %v594
    %v643 = vpack.c.b16 %v599, %v595
    %v644 = vpack.c.b16 %v604, %v600
    %v645 = vpack.c.b16 %v605, %v601
    %v646 = vpack.c.b16 %v606, %v602
    %v647 = vpack.c.b16 %v607, %v603
    %v648 = vpack.c.b16 %v612, %v608
    %v649 = vpack.c.b16 %v613, %v609
    %v650 = vpack.c.b16 %v614, %v610
    %v651 = vpack.c.b16 %v615, %v611
    %v652 = vpack.c.b16 %v620, %v616
    %v653 = vpack.c.b16 %v621, %v617
    %v654 = vpack.c.b16 %v622, %v618
    %v655 = vpack.c.b16 %v623, %v619
    %688 = vmatpush.bf16.msra.mxu0 %v652
    %689 = vmatpush.bf16.msra.mxu0 %v648
    %690 = vmatpush.bf16.msra.mxu0 %v644
    %691 = vmatpush.bf16.msra.mxu0 %v640
    %692 = vmatpush.bf16.msra.mxu0 %v636
    %693 = vmatpush.bf16.msra.mxu0 %v632
    %694 = vmatpush.bf16.msra.mxu0 %v628
    %695 = vmatpush.bf16.msra.mxu0 %v624
    %696 = vmatmul.bf16.gmra.mxu0 %v527
    %v697 = vpop.f32.mrf.mxu0
    %v698 = vadd.f32 0.0, %v697
    %v699 = vpop.f32.mrf.mxu0
    %700 = vdwg.mxu0
    %701 = vmatpush.bf16.msra.mxu0 %v653
    %702 = vmatpush.bf16.msra.mxu0 %v649
    %703 = vmatpush.bf16.msra.mxu0 %v645
    %704 = vmatpush.bf16.msra.mxu0 %v641
    %705 = vmatpush.bf16.msra.mxu0 %v637
    %706 = vmatpush.bf16.msra.mxu0 %v633
    %707 = vmatpush.bf16.msra.mxu0 %v629
    %708 = vmatpush.bf16.msra.mxu0 %v625
    %709 = vmatmul.bf16.gmra.mxu0 %v527
    %v710 = vpop.f32.mrf.mxu0
    %v711 = vadd.f32 0.0, %v710
    %v712 = vpop.f32.mrf.mxu0
    %713 = vdwg.mxu0
    %714 = vmatpush.bf16.msra.mxu0 %v654
    %715 = vmatpush.bf16.msra.mxu0 %v650
    %716 = vmatpush.bf16.msra.mxu0 %v646
    %717 = vmatpush.bf16.msra.mxu0 %v642
    %718 = vmatpush.bf16.msra.mxu0 %v638
    %719 = vmatpush.bf16.msra.mxu0 %v634
    %720 = vmatpush.bf16.msra.mxu0 %v630
    %721 = vmatpush.bf16.msra.mxu0 %v626
    %722 = vmatmul.bf16.gmra.mxu0 %v527
    %v723 = vpop.f32.mrf.mxu0
    %v724 = vadd.f32 0.0, %v723
    %v725 = vpop.f32.mrf.mxu0
    %726 = vdwg.mxu0
    %727 = vmatpush.bf16.msra.mxu0 %v655
    %728 = vmatpush.bf16.msra.mxu0 %v651
    %729 = vmatpush.bf16.msra.mxu0 %v647
    %730 = vmatpush.bf16.msra.mxu0 %v643
    %731 = vmatpush.bf16.msra.mxu0 %v639
    %732 = vmatpush.bf16.msra.mxu0 %v635
    %733 = vmatpush.bf16.msra.mxu0 %v631
    %734 = vmatpush.bf16.msra.mxu0 %v627
    %735 = vmatmul.bf16.gmra.mxu0 %v527
    %v736 = vpop.f32.mrf.mxu0
    %v737 = vadd.f32 0.0, %v736
    %v738 = vpop.f32.mrf.mxu0
    %739 = vdwg.mxu0
    %v740 = vadd.f32 %v523, %v698
    %v741 = vadd.f32 %v524, %v711
    %v742 = vadd.f32 %v525, %v724
    %v743 = vadd.f32 %v526, %v737
    %v744 = vxor.u32 %v740, 2147483648
    %v745 = vxor.u32 %v741, 2147483648
    %v746 = vxor.u32 %v742, 2147483648
    %v747 = vmul.f32 %v744, 1.442695
    %v748 = vpow.pop %v747
    %v749 = vmul.f32 %v745, 1.442695
    %v750 = vpow.pop %v749
    %v751 = vmul.f32 %v746, 1.442695
    %v752 = vpow.pop %v751
    %v753 = vadd.f32 %v748, 1.0
    %v754 = vadd.f32 %v750, 1.0
    %v755 = vadd.f32 %v752, 1.0
    %v756 = vrcp.pop %v753
    %v757 = vmul.f32 %v753, %v756
    %v758 = vsub.f32 1.0, %v757
    %v759 = vmul.f32 %v756, %v758
    %v760 = vadd.f32 %v756, %v759
    %vm761 = vweird.f32 %v753
    %vm762 = vweird.f32 %v756
    %vm763 = vmor %vm761, %vm762
    %v764 = vsel %vm763, %v756, %v760
    %v765 = vand.u32 2147483647, %v753
    %vm766 = vcmp.eq.f32.partialorder %v765, 8.507059e+37
    %v767 = vand.u32 %v753, 2147483648
    %v768 = vor.u32 1.1754944e-38, %v767
    %v769 = vsel %vm766, %v768, %v764
    %v770 = vmul.f32 1.0, %v769
    %v771 = vrcp.pop %v754
    %v772 = vmul.f32 %v754, %v771
    %v773 = vsub.f32 1.0, %v772
    %v774 = vmul.f32 %v771, %v773
    %v775 = vadd.f32 %v771, %v774
    %vm776 = vweird.f32 %v754
    %vm777 = vweird.f32 %v771
    %vm778 = vmor %vm776, %vm777
    %v779 = vsel %vm778, %v771, %v775
    %v780 = vand.u32 2147483647, %v754
    %vm781 = vcmp.eq.f32.partialorder %v780, 8.507059e+37
    %v782 = vand.u32 %v754, 2147483648
    %v783 = vor.u32 1.1754944e-38, %v782
    %v784 = vsel %vm781, %v783, %v779
    %v785 = vmul.f32 1.0, %v784
    %v786 = vrcp.pop %v755
    %v787 = vmul.f32 %v755, %v786
    %v788 = vsub.f32 1.0, %v787
    %v789 = vmul.f32 %v786, %v788
    %v790 = vadd.f32 %v786, %v789
    %vm791 = vweird.f32 %v755
    %vm792 = vweird.f32 %v786
    %vm793 = vmor %vm791, %vm792
    %v794 = vsel %vm793, %v786, %v790
    %v795 = vand.u32 2147483647, %v755
    %vm796 = vcmp.eq.f32.partialorder %v795, 8.507059e+37
    %v797 = vand.u32 %v755, 2147483648
    %v798 = vor.u32 1.1754944e-38, %v797
    %v799 = vsel %vm796, %v798, %v794
    %v800 = vmul.f32 1.0, %v799
    %v801 = vtanh.pop %v743
    %v802 = vmul.f32 %v785, %v519
    %v803 = vmul.f32 %v770, %v801
    %v804 = vadd.f32 %v802, %v803
    %v805 = vtanh.pop %v804
    %v806 = vmul.f32 %v800, %v805
    %v807 = vstv %s517
    %vm808 = vcmp.lt.s32.totalorder %v807, %v516
    %v809 = vsel %vm808, 1, 0
    %810 = vset.pattern.permute.xlu0 0
    %811 = vperm.xlu0 %810, %v809
    %v812 = vpop.permute.xlu0 %811
    %vm813 = vcmp.eq.s32.totalorder %v812, 1
    %v814 = vsel %vm813, %v806, %v518
    %v815 = vsel %vm813, %v804, %v519
    %s816 = smul.u32 1, 4
    %s817 = smul.addr %s816, 8
    %s818 = scalar_lea.vmem [#allocation4], %s817
    %v819 = vld [vmem:[%s818] sm:$0xff]
    %v820 = vld [vmem:[%s818 + $0x8] sm:$0xff]
    %v821 = vld [vmem:[%s818 + $0x10] sm:$0xff]
    %v822 = vld [vmem:[%s818 + $0x18] sm:$0xff]
    %v823 = vpack.c.bf16 %v814, %v814
    %824 = vmatpush.bf16.msra.mxu0 %v652
    %825 = vmatpush.bf16.msra.mxu0 %v648
    %826 = vmatpush.bf16.msra.mxu0 %v644
    %827 = vmatpush.bf16.msra.mxu0 %v640
    %828 = vmatpush.bf16.msra.mxu0 %v636
    %829 = vmatpush.bf16.msra.mxu0 %v632
    %830 = vmatpush.bf16.msra.mxu0 %v628
    %831 = vmatpush.bf16.msra.mxu0 %v624
    %832 = vmatmul.bf16.gmra.mxu0 %v823
    %v833 = vpop.f32.mrf.mxu0
    %v834 = vadd.f32 0.0, %v833
    %v835 = vpop.f32.mrf.mxu0
    %836 = vdwg.mxu0
    %837 = vmatpush.bf16.msra.mxu0 %v653
    %838 = vmatpush.bf16.msra.mxu0 %v649
    %839 = vmatpush.bf16.msra.mxu0 %v645
    %840 = vmatpush.bf16.msra.mxu0 %v641
    %841 = vmatpush.bf16.msra.mxu0 %v637
    %842 = vmatpush.bf16.msra.mxu0 %v633
    %843 = vmatpush.bf16.msra.mxu0 %v629
    %844 = vmatpush.bf16.msra.mxu0 %v625
    %845 = vmatmul.bf16.gmra.mxu0 %v823
    %v846 = vpop.f32.mrf.mxu0
    %v847 = vadd.f32 0.0, %v846
    %v848 = vpop.f32.mrf.mxu0
    %849 = vdwg.mxu0
    %850 = vmatpush.bf16.msra.mxu0 %v654
    %851 = vmatpush.bf16.msra.mxu0 %v650
    %852 = vmatpush.bf16.msra.mxu0 %v646
    %853 = vmatpush.bf16.msra.mxu0 %v642
    %854 = vmatpush.bf16.msra.mxu0 %v638
    %855 = vmatpush.bf16.msra.mxu0 %v634
    %856 = vmatpush.bf16.msra.mxu0 %v630
    %857 = vmatpush.bf16.msra.mxu0 %v626
    %858 = vmatmul.bf16.gmra.mxu0 %v823
    %v859 = vpop.f32.mrf.mxu0
    %v860 = vadd.f32 0.0, %v859
    %v861 = vpop.f32.mrf.mxu0
    %862 = vdwg.mxu0
    %863 = vmatpush.bf16.msra.mxu0 %v655
    %864 = vmatpush.bf16.msra.mxu0 %v651
    %865 = vmatpush.bf16.msra.mxu0 %v647
    %866 = vmatpush.bf16.msra.mxu0 %v643
    %867 = vmatpush.bf16.msra.mxu0 %v639
    %868 = vmatpush.bf16.msra.mxu0 %v635
    %869 = vmatpush.bf16.msra.mxu0 %v631
    %870 = vmatpush.bf16.msra.mxu0 %v627
    %871 = vmatmul.bf16.gmra.mxu0 %v823
    %v872 = vpop.f32.mrf.mxu0
    %v873 = vadd.f32 0.0, %v872
    %v874 = vpop.f32.mrf.mxu0
    %875 = vdwg.mxu0
    %v876 = vadd.f32 %v819, %v834
    %v877 = vadd.f32 %v820, %v847
    %v878 = vadd.f32 %v821, %v860
    %v879 = vadd.f32 %v822, %v873
    %v880 = vxor.u32 %v876, 2147483648
    %v881 = vxor.u32 %v877, 2147483648
    %v882 = vxor.u32 %v878, 2147483648
    %v883 = vmul.f32 %v880, 1.442695
    %v884 = vpow.pop %v883
    %v885 = vmul.f32 %v881, 1.442695
    %v886 = vpow.pop %v885
    %v887 = vmul.f32 %v882, 1.442695
    %v888 = vpow.pop %v887
    %v889 = vadd.f32 %v884, 1.0
    %v890 = vadd.f32 %v886, 1.0
    %v891 = vadd.f32 %v888, 1.0
    %v892 = vrcp.pop %v889
    %v893 = vmul.f32 %v889, %v892
    %v894 = vsub.f32 1.0, %v893
    %v895 = vmul.f32 %v892, %v894
    %v896 = vadd.f32 %v892, %v895
    %vm897 = vweird.f32 %v889
    %vm898 = vweird.f32 %v892
    %vm899 = vmor %vm897, %vm898
    %v900 = vsel %vm899, %v892, %v896
    %v901 = vand.u32 2147483647, %v889
    %vm902 = vcmp.eq.f32.partialorder %v901, 8.507059e+37
    %v903 = vand.u32 %v889, 2147483648
    %v904 = vor.u32 1.1754944e-38, %v903
    %v905 = vsel %vm902, %v904, %v900
    %v906 = vmul.f32 1.0, %v905
    %v907 = vrcp.pop %v890
    %v908 = vmul.f32 %v890, %v907
    %v909 = vsub.f32 1.0, %v908
    %v910 = vmul.f32 %v907, %v909
    %v911 = vadd.f32 %v907, %v910
    %vm912 = vweird.f32 %v890
    %vm913 = vweird.f32 %v907
    %vm914 = vmor %vm912, %vm913
    %v915 = vsel %vm914, %v907, %v911
    %v916 = vand.u32 2147483647, %v890
    %vm917 = vcmp.eq.f32.partialorder %v916, 8.507059e+37
    %v918 = vand.u32 %v890, 2147483648
    %v919 = vor.u32 1.1754944e-38, %v918
    %v920 = vsel %vm917, %v919, %v915
    %v921 = vmul.f32 1.0, %v920
    %v922 = vrcp.pop %v891
    %v923 = vmul.f32 %v891, %v922
    %v924 = vsub.f32 1.0, %v923
    %v925 = vmul.f32 %v922, %v924
    %v926 = vadd.f32 %v922, %v925
    %vm927 = vweird.f32 %v891
    %vm928 = vweird.f32 %v922
    %vm929 = vmor %vm927, %vm928
    %v930 = vsel %vm929, %v922, %v926
    %v931 = vand.u32 2147483647, %v891
    %vm932 = vcmp.eq.f32.partialorder %v931, 8.507059e+37
    %v933 = vand.u32 %v891, 2147483648
    %v934 = vor.u32 1.1754944e-38, %v933
    %v935 = vsel %vm932, %v934, %v930
    %v936 = vmul.f32 1.0, %v935
    %v937 = vtanh.pop %v879
    %v938 = vmul.f32 %v921, %v815
    %v939 = vmul.f32 %v906, %v937
    %v940 = vadd.f32 %v938, %v939
    %v941 = vtanh.pop %v940
    %v942 = vmul.f32 %v936, %v941
    %s943 = sadd.s32 %s517, 1
    %v944 = vstv %s943
    %vm945 = vcmp.lt.s32.totalorder %v944, %v516
    %v946 = vsel %vm945, 1, 0
    %947 = vset.pattern.permute.xlu0 0
    %948 = vperm.xlu0 %947, %v946
    %v949 = vpop.permute.xlu0 %948
    %vm950 = vcmp.eq.s32.totalorder %v949, 1
    %v951 = vsel %vm950, %v942, %v814
    %v952 = vsel %vm950, %v940, %v815
    %s953 = smul.u32 2, 4
    %s954 = smul.addr %s953, 8
    %s955 = scalar_lea.vmem [#allocation4], %s954
    %v956 = vld [vmem:[%s955] sm:$0xff]
    %v957 = vld [vmem:[%s955 + $0x8] sm:$0xff]
    %v958 = vld [vmem:[%s955 + $0x10] sm:$0xff]
    %v959 = vld [vmem:[%s955 + $0x18] sm:$0xff]
    %v960 = vpack.c.bf16 %v951, %v951
    %961 = vmatpush.bf16.msra.mxu0 %v652
    %962 = vmatpush.bf16.msra.mxu0 %v648
    %963 = vmatpush.bf16.msra.mxu0 %v644
    %964 = vmatpush.bf16.msra.mxu0 %v640
    %965 = vmatpush.bf16.msra.mxu0 %v636
    %966 = vmatpush.bf16.msra.mxu0 %v632
    %967 = vmatpush.bf16.msra.mxu0 %v628
    %968 = vmatpush.bf16.msra.mxu0 %v624
    %969 = vmatmul.bf16.gmra.mxu0 %v960
    %v970 = vpop.f32.mrf.mxu0
    %v971 = vadd.f32 0.0, %v970
    %v972 = vpop.f32.mrf.mxu0
    %973 = vdwg.mxu0
    %974 = vmatpush.bf16.msra.mxu0 %v653
    %975 = vmatpush.bf16.msra.mxu0 %v649
    %976 = vmatpush.bf16.msra.mxu0 %v645
    %977 = vmatpush.bf16.msra.mxu0 %v641
    %978 = vmatpush.bf16.msra.mxu0 %v637
    %979 = vmatpush.bf16.msra.mxu0 %v633
    %980 = vmatpush.bf16.msra.mxu0 %v629
    %981 = vmatpush.bf16.msra.mxu0 %v625
    %982 = vmatmul.bf16.gmra.mxu0 %v960
    %v983 = vpop.f32.mrf.mxu0
    %v984 = vadd.f32 0.0, %v983
    %v985 = vpop.f32.mrf.mxu0
    %986 = vdwg.mxu0
    %987 = vmatpush.bf16.msra.mxu0 %v654
    %988 = vmatpush.bf16.msra.mxu0 %v650
    %989 = vmatpush.bf16.msra.mxu0 %v646
    %990 = vmatpush.bf16.msra.mxu0 %v642
    %991 = vmatpush.bf16.msra.mxu0 %v638
    %992 = vmatpush.bf16.msra.mxu0 %v634
    %993 = vmatpush.bf16.msra.mxu0 %v630
    %994 = vmatpush.bf16.msra.mxu0 %v626
    %995 = vmatmul.bf16.gmra.mxu0 %v960
    %v996 = vpop.f32.mrf.mxu0
    %v997 = vadd.f32 0.0, %v996
    %v998 = vpop.f32.mrf.mxu0
    %999 = vdwg.mxu0
    %1000 = vmatpush.bf16.msra.mxu0 %v655
    %1001 = vmatpush.bf16.msra.mxu0 %v651
    %1002 = vmatpush.bf16.msra.mxu0 %v647
    %1003 = vmatpush.bf16.msra.mxu0 %v643
    %1004 = vmatpush.bf16.msra.mxu0 %v639
    %1005 = vmatpush.bf16.msra.mxu0 %v635
    %1006 = vmatpush.bf16.msra.mxu0 %v631
    %1007 = vmatpush.bf16.msra.mxu0 %v627
    %1008 = vmatmul.bf16.gmra.mxu0 %v960
    %v1009 = vpop.f32.mrf.mxu0
    %v1010 = vadd.f32 0.0, %v1009
    %v1011 = vpop.f32.mrf.mxu0
    %1012 = vdwg.mxu0
    %v1013 = vadd.f32 %v956, %v971
    %v1014 = vadd.f32 %v957, %v984
    %v1015 = vadd.f32 %v958, %v997
    %v1016 = vadd.f32 %v959, %v1010
    %v1017 = vxor.u32 %v1013, 2147483648
    %v1018 = vxor.u32 %v1014, 2147483648
    %v1019 = vxor.u32 %v1015, 2147483648
    %v1020 = vmul.f32 %v1017, 1.442695
    %v1021 = vpow.pop %v1020
    %v1022 = vmul.f32 %v1018, 1.442695
    %v1023 = vpow.pop %v1022
    %v1024 = vmul.f32 %v1019, 1.442695
    %v1025 = vpow.pop %v1024
    %v1026 = vadd.f32 %v1021, 1.0
    %v1027 = vadd.f32 %v1023, 1.0
    %v1028 = vadd.f32 %v1025, 1.0
    %v1029 = vrcp.pop %v1026
    %v1030 = vmul.f32 %v1026, %v1029
    %v1031 = vsub.f32 1.0, %v1030
    %v1032 = vmul.f32 %v1029, %v1031
    %v1033 = vadd.f32 %v1029, %v1032
    %vm1034 = vweird.f32 %v1026
    %vm1035 = vweird.f32 %v1029
    %vm1036 = vmor %vm1034, %vm1035
    %v1037 = vsel %vm1036, %v1029, %v1033
    %v1038 = vand.u32 2147483647, %v1026
    %vm1039 = vcmp.eq.f32.partialorder %v1038, 8.507059e+37
    %v1040 = vand.u32 %v1026, 2147483648
    %v1041 = vor.u32 1.1754944e-38, %v1040
    %v1042 = vsel %vm1039, %v1041, %v1037
    %v1043 = vmul.f32 1.0, %v1042
    %v1044 = vrcp.pop %v1027
    %v1045 = vmul.f32 %v1027, %v1044
    %v1046 = vsub.f32 1.0, %v1045
    %v1047 = vmul.f32 %v1044, %v1046
    %v1048 = vadd.f32 %v1044, %v1047
    %vm1049 = vweird.f32 %v1027
    %vm1050 = vweird.f32 %v1044
    %vm1051 = vmor %vm1049, %vm1050
    %v1052 = vsel %vm1051, %v1044, %v1048
    %v1053 = vand.u32 2147483647, %v1027
    %vm1054 = vcmp.eq.f32.partialorder %v1053, 8.507059e+37
    %v1055 = vand.u32 %v1027, 2147483648
    %v1056 = vor.u32 1.1754944e-38, %v1055
    %v1057 = vsel %vm1054, %v1056, %v1052
    %v1058 = vmul.f32 1.0, %v1057
    %v1059 = vrcp.pop %v1028
    %v1060 = vmul.f32 %v1028, %v1059
    %v1061 = vsub.f32 1.0, %v1060
    %v1062 = vmul.f32 %v1059, %v1061
    %v1063 = vadd.f32 %v1059, %v1062
    %vm1064 = vweird.f32 %v1028
    %vm1065 = vweird.f32 %v1059
    %vm1066 = vmor %vm1064, %vm1065
    %v1067 = vsel %vm1066, %v1059, %v1063
    %v1068 = vand.u32 2147483647, %v1028
    %vm1069 = vcmp.eq.f32.partialorder %v1068, 8.507059e+37
    %v1070 = vand.u32 %v1028, 2147483648
    %v1071 = vor.u32 1.1754944e-38, %v1070
    %v1072 = vsel %vm1069, %v1071, %v1067
    %v1073 = vmul.f32 1.0, %v1072
    %v1074 = vtanh.pop %v1016
    %v1075 = vmul.f32 %v1058, %v952
    %v1076 = vmul.f32 %v1043, %v1074
    %v1077 = vadd.f32 %v1075, %v1076
    %v1078 = vtanh.pop %v1077
    %v1079 = vmul.f32 %v1073, %v1078
    %s1080 = sadd.s32 %s517, 2
    %v1081 = vstv %s1080
    %vm1082 = vcmp.lt.s32.totalorder %v1081, %v516
    %v1083 = vsel %vm1082, 1, 0
    %1084 = vset.pattern.permute.xlu0 0
    %1085 = vperm.xlu0 %1084, %v1083
    %v1086 = vpop.permute.xlu0 %1085
    %vm1087 = vcmp.eq.s32.totalorder %v1086, 1
    %v1088 = vsel %vm1087, %v1079, %v951
    %v1089 = vsel %vm1087, %v1077, %v952
    %s1090 = smul.u32 3, 4
    %s1091 = smul.addr %s1090, 8
    %s1092 = scalar_lea.vmem [#allocation4], %s1091
    %v1093 = vld [vmem:[%s1092] sm:$0xff]
    %v1094 = vld [vmem:[%s1092 + $0x8] sm:$0xff]
    %v1095 = vld [vmem:[%s1092 + $0x10] sm:$0xff]
    %v1096 = vld [vmem:[%s1092 + $0x18] sm:$0xff]
    %v1097 = vpack.c.bf16 %v1088, %v1088
    %1098 = vmatpush.bf16.msra.mxu0 %v652
    %1099 = vmatpush.bf16.msra.mxu0 %v648
    %1100 = vmatpush.bf16.msra.mxu0 %v644
    %1101 = vmatpush.bf16.msra.mxu0 %v640
    %1102 = vmatpush.bf16.msra.mxu0 %v636
    %1103 = vmatpush.bf16.msra.mxu0 %v632
    %1104 = vmatpush.bf16.msra.mxu0 %v628
    %1105 = vmatpush.bf16.msra.mxu0 %v624
    %1106 = vmatmul.bf16.gmra.mxu0 %v1097
    %v1107 = vpop.f32.mrf.mxu0
    %v1108 = vadd.f32 0.0, %v1107
    %v1109 = vpop.f32.mrf.mxu0
    %1110 = vdwg.mxu0
    %1111 = vmatpush.bf16.msra.mxu0 %v653
    %1112 = vmatpush.bf16.msra.mxu0 %v649
    %1113 = vmatpush.bf16.msra.mxu0 %v645
    %1114 = vmatpush.bf16.msra.mxu0 %v641
    %1115 = vmatpush.bf16.msra.mxu0 %v637
    %1116 = vmatpush.bf16.msra.mxu0 %v633
    %1117 = vmatpush.bf16.msra.mxu0 %v629
    %1118 = vmatpush.bf16.msra.mxu0 %v625
    %1119 = vmatmul.bf16.gmra.mxu0 %v1097
    %v1120 = vpop.f32.mrf.mxu0
    %v1121 = vadd.f32 0.0, %v1120
    %v1122 = vpop.f32.mrf.mxu0
    %1123 = vdwg.mxu0
    %1124 = vmatpush.bf16.msra.mxu0 %v654
    %1125 = vmatpush.bf16.msra.mxu0 %v650
    %1126 = vmatpush.bf16.msra.mxu0 %v646
    %1127 = vmatpush.bf16.msra.mxu0 %v642
    %1128 = vmatpush.bf16.msra.mxu0 %v638
    %1129 = vmatpush.bf16.msra.mxu0 %v634
    %1130 = vmatpush.bf16.msra.mxu0 %v630
    %1131 = vmatpush.bf16.msra.mxu0 %v626
    %1132 = vmatmul.bf16.gmra.mxu0 %v1097
    %v1133 = vpop.f32.mrf.mxu0
    %v1134 = vadd.f32 0.0, %v1133
    %v1135 = vpop.f32.mrf.mxu0
    %1136 = vdwg.mxu0
    %1137 = vmatpush.bf16.msra.mxu0 %v655
    %1138 = vmatpush.bf16.msra.mxu0 %v651
    %1139 = vmatpush.bf16.msra.mxu0 %v647
    %1140 = vmatpush.bf16.msra.mxu0 %v643
    %1141 = vmatpush.bf16.msra.mxu0 %v639
    %1142 = vmatpush.bf16.msra.mxu0 %v635
    %1143 = vmatpush.bf16.msra.mxu0 %v631
    %1144 = vmatpush.bf16.msra.mxu0 %v627
    %1145 = vmatmul.bf16.gmra.mxu0 %v1097
    %v1146 = vpop.f32.mrf.mxu0
    %v1147 = vadd.f32 0.0, %v1146
    %v1148 = vpop.f32.mrf.mxu0
    %1149 = vdwg.mxu0
    %v1150 = vadd.f32 %v1093, %v1108
    %v1151 = vadd.f32 %v1094, %v1121
    %v1152 = vadd.f32 %v1095, %v1134
    %v1153 = vadd.f32 %v1096, %v1147
    %v1154 = vxor.u32 %v1150, 2147483648
    %v1155 = vxor.u32 %v1151, 2147483648
    %v1156 = vxor.u32 %v1152, 2147483648
    %v1157 = vmul.f32 %v1154, 1.442695
    %v1158 = vpow.pop %v1157
    %v1159 = vmul.f32 %v1155, 1.442695
    %v1160 = vpow.pop %v1159
    %v1161 = vmul.f32 %v1156, 1.442695
    %v1162 = vpow.pop %v1161
    %v1163 = vadd.f32 %v1158, 1.0
    %v1164 = vadd.f32 %v1160, 1.0
    %v1165 = vadd.f32 %v1162, 1.0
    %v1166 = vrcp.pop %v1163
    %v1167 = vmul.f32 %v1163, %v1166
    %v1168 = vsub.f32 1.0, %v1167
    %v1169 = vmul.f32 %v1166, %v1168
    %v1170 = vadd.f32 %v1166, %v1169
    %vm1171 = vweird.f32 %v1163
    %vm1172 = vweird.f32 %v1166
    %vm1173 = vmor %vm1171, %vm1172
    %v1174 = vsel %vm1173, %v1166, %v1170
    %v1175 = vand.u32 2147483647, %v1163
    %vm1176 = vcmp.eq.f32.partialorder %v1175, 8.507059e+37
    %v1177 = vand.u32 %v1163, 2147483648
    %v1178 = vor.u32 1.1754944e-38, %v1177
    %v1179 = vsel %vm1176, %v1178, %v1174
    %v1180 = vmul.f32 1.0, %v1179
    %v1181 = vrcp.pop %v1164
    %v1182 = vmul.f32 %v1164, %v1181
    %v1183 = vsub.f32 1.0, %v1182
    %v1184 = vmul.f32 %v1181, %v1183
    %v1185 = vadd.f32 %v1181, %v1184
    %vm1186 = vweird.f32 %v1164
    %vm1187 = vweird.f32 %v1181
    %vm1188 = vmor %vm1186, %vm1187
    %v1189 = vsel %vm1188, %v1181, %v1185
    %v1190 = vand.u32 2147483647, %v1164
    %vm1191 = vcmp.eq.f32.partialorder %v1190, 8.507059e+37
    %v1192 = vand.u32 %v1164, 2147483648
    %v1193 = vor.u32 1.1754944e-38, %v1192
    %v1194 = vsel %vm1191, %v1193, %v1189
    %v1195 = vmul.f32 1.0, %v1194
    %v1196 = vrcp.pop %v1165
    %v1197 = vmul.f32 %v1165, %v1196
    %v1198 = vsub.f32 1.0, %v1197
    %v1199 = vmul.f32 %v1196, %v1198
    %v1200 = vadd.f32 %v1196, %v1199
    %vm1201 = vweird.f32 %v1165
    %vm1202 = vweird.f32 %v1196
    %vm1203 = vmor %vm1201, %vm1202
    %v1204 = vsel %vm1203, %v1196, %v1200
    %v1205 = vand.u32 2147483647, %v1165
    %vm1206 = vcmp.eq.f32.partialorder %v1205, 8.507059e+37
    %v1207 = vand.u32 %v1165, 2147483648
    %v1208 = vor.u32 1.1754944e-38, %v1207
    %v1209 = vsel %vm1206, %v1208, %v1204
    %v1210 = vmul.f32 1.0, %v1209
    %v1211 = vtanh.pop %v1153
    %v1212 = vmul.f32 %v1195, %v1089
    %v1213 = vmul.f32 %v1180, %v1211
    %v1214 = vadd.f32 %v1212, %v1213
    %v1215 = vtanh.pop %v1214
    %v1216 = vmul.f32 %v1210, %v1215
    %s1217 = sadd.s32 %s517, 3
    %v1218 = vstv %s1217
    %vm1219 = vcmp.lt.s32.totalorder %v1218, %v516
    %v1220 = vsel %vm1219, 1, 0
    %1221 = vset.pattern.permute.xlu0 0
    %1222 = vperm.xlu0 %1221, %v1220
    %v1223 = vpop.permute.xlu0 %1222
    %vm1224 = vcmp.eq.s32.totalorder %v1223, 1
    %v1225 = vsel %vm1224, %v1216, %v1088
    %v1226 = vsel %vm1224, %v1214, %v1089
    %s1227 = smul.u32 4, 4
    %s1228 = smul.addr %s1227, 8
    %s1229 = scalar_lea.vmem [#allocation4], %s1228
    %v1230 = vld [vmem:[%s1229] sm:$0xff]
    %v1231 = vld [vmem:[%s1229 + $0x8] sm:$0xff]
    %v1232 = vld [vmem:[%s1229 + $0x10] sm:$0xff]
    %v1233 = vld [vmem:[%s1229 + $0x18] sm:$0xff]
    %v1234 = vpack.c.bf16 %v1225, %v1225
    %1235 = vmatpush.bf16.msra.mxu0 %v652
    %1236 = vmatpush.bf16.msra.mxu0 %v648
    %1237 = vmatpush.bf16.msra.mxu0 %v644
    %1238 = vmatpush.bf16.msra.mxu0 %v640
    %1239 = vmatpush.bf16.msra.mxu0 %v636
    %1240 = vmatpush.bf16.msra.mxu0 %v632
    %1241 = vmatpush.bf16.msra.mxu0 %v628
    %1242 = vmatpush.bf16.msra.mxu0 %v624
    %1243 = vmatmul.bf16.gmra.mxu0 %v1234
    %v1244 = vpop.f32.mrf.mxu0
    %v1245 = vadd.f32 0.0, %v1244
    %v1246 = vpop.f32.mrf.mxu0
    %1247 = vdwg.mxu0
    %1248 = vmatpush.bf16.msra.mxu0 %v653
    %1249 = vmatpush.bf16.msra.mxu0 %v649
    %1250 = vmatpush.bf16.msra.mxu0 %v645
    %1251 = vmatpush.bf16.msra.mxu0 %v641
    %1252 = vmatpush.bf16.msra.mxu0 %v637
    %1253 = vmatpush.bf16.msra.mxu0 %v633
    %1254 = vmatpush.bf16.msra.mxu0 %v629
    %1255 = vmatpush.bf16.msra.mxu0 %v625
    %1256 = vmatmul.bf16.gmra.mxu0 %v1234
    %v1257 = vpop.f32.mrf.mxu0
    %v1258 = vadd.f32 0.0, %v1257
    %v1259 = vpop.f32.mrf.mxu0
    %1260 = vdwg.mxu0
    %1261 = vmatpush.bf16.msra.mxu0 %v654
    %1262 = vmatpush.bf16.msra.mxu0 %v650
    %1263 = vmatpush.bf16.msra.mxu0 %v646
    %1264 = vmatpush.bf16.msra.mxu0 %v642
    %1265 = vmatpush.bf16.msra.mxu0 %v638
    %1266 = vmatpush.bf16.msra.mxu0 %v634
    %1267 = vmatpush.bf16.msra.mxu0 %v630
    %1268 = vmatpush.bf16.msra.mxu0 %v626
    %1269 = vmatmul.bf16.gmra.mxu0 %v1234
    %v1270 = vpop.f32.mrf.mxu0
    %v1271 = vadd.f32 0.0, %v1270
    %v1272 = vpop.f32.mrf.mxu0
    %1273 = vdwg.mxu0
    %1274 = vmatpush.bf16.msra.mxu0 %v655
    %1275 = vmatpush.bf16.msra.mxu0 %v651
    %1276 = vmatpush.bf16.msra.mxu0 %v647
    %1277 = vmatpush.bf16.msra.mxu0 %v643
    %1278 = vmatpush.bf16.msra.mxu0 %v639
    %1279 = vmatpush.bf16.msra.mxu0 %v635
    %1280 = vmatpush.bf16.msra.mxu0 %v631
    %1281 = vmatpush.bf16.msra.mxu0 %v627
    %1282 = vmatmul.bf16.gmra.mxu0 %v1234
    %v1283 = vpop.f32.mrf.mxu0
    %v1284 = vadd.f32 0.0, %v1283
    %v1285 = vpop.f32.mrf.mxu0
    %1286 = vdwg.mxu0
    %v1287 = vadd.f32 %v1230, %v1245
    %v1288 = vadd.f32 %v1231, %v1258
    %v1289 = vadd.f32 %v1232, %v1271
    %v1290 = vadd.f32 %v1233, %v1284
    %v1291 = vxor.u32 %v1287, 2147483648
    %v1292 = vxor.u32 %v1288, 2147483648
    %v1293 = vxor.u32 %v1289, 2147483648
    %v1294 = vmul.f32 %v1291, 1.442695
    %v1295 = vpow.pop %v1294
    %v1296 = vmul.f32 %v1292, 1.442695
    %v1297 = vpow.pop %v1296
    %v1298 = vmul.f32 %v1293, 1.442695
    %v1299 = vpow.pop %v1298
    %v1300 = vadd.f32 %v1295, 1.0
    %v1301 = vadd.f32 %v1297, 1.0
    %v1302 = vadd.f32 %v1299, 1.0
    %v1303 = vrcp.pop %v1300
    %v1304 = vmul.f32 %v1300, %v1303
    %v1305 = vsub.f32 1.0, %v1304
    %v1306 = vmul.f32 %v1303, %v1305
    %v1307 = vadd.f32 %v1303, %v1306
    %vm1308 = vweird.f32 %v1300
    %vm1309 = vweird.f32 %v1303
    %vm1310 = vmor %vm1308, %vm1309
    %v1311 = vsel %vm1310, %v1303, %v1307
    %v1312 = vand.u32 2147483647, %v1300
    %vm1313 = vcmp.eq.f32.partialorder %v1312, 8.507059e+37
    %v1314 = vand.u32 %v1300, 2147483648
    %v1315 = vor.u32 1.1754944e-38, %v1314
    %v1316 = vsel %vm1313, %v1315, %v1311
    %v1317 = vmul.f32 1.0, %v1316
    %v1318 = vrcp.pop %v1301
    %v1319 = vmul.f32 %v1301, %v1318
    %v1320 = vsub.f32 1.0, %v1319
    %v1321 = vmul.f32 %v1318, %v1320
    %v1322 = vadd.f32 %v1318, %v1321
    %vm1323 = vweird.f32 %v1301
    %vm1324 = vweird.f32 %v1318
    %vm1325 = vmor %vm1323, %vm1324
    %v1326 = vsel %vm1325, %v1318, %v1322
    %v1327 = vand.u32 2147483647, %v1301
    %vm1328 = vcmp.eq.f32.partialorder %v1327, 8.507059e+37
    %v1329 = vand.u32 %v1301, 2147483648
    %v1330 = vor.u32 1.1754944e-38, %v1329
    %v1331 = vsel %vm1328, %v1330, %v1326
    %v1332 = vmul.f32 1.0, %v1331
    %v1333 = vrcp.pop %v1302
    %v1334 = vmul.f32 %v1302, %v1333
    %v1335 = vsub.f32 1.0, %v1334
    %v1336 = vmul.f32 %v1333, %v1335
    %v1337 = vadd.f32 %v1333, %v1336
    %vm1338 = vweird.f32 %v1302
    %vm1339 = vweird.f32 %v1333
    %vm1340 = vmor %vm1338, %vm1339
    %v1341 = vsel %vm1340, %v1333, %v1337
    %v1342 = vand.u32 2147483647, %v1302
    %vm1343 = vcmp.eq.f32.partialorder %v1342, 8.507059e+37
    %v1344 = vand.u32 %v1302, 2147483648
    %v1345 = vor.u32 1.1754944e-38, %v1344
    %v1346 = vsel %vm1343, %v1345, %v1341
    %v1347 = vmul.f32 1.0, %v1346
    %v1348 = vtanh.pop %v1290
    %v1349 = vmul.f32 %v1332, %v1226
    %v1350 = vmul.f32 %v1317, %v1348
    %v1351 = vadd.f32 %v1349, %v1350
    %v1352 = vtanh.pop %v1351
    %v1353 = vmul.f32 %v1347, %v1352
    %s1354 = sadd.s32 %s517, 4
    %v1355 = vstv %s1354
    %vm1356 = vcmp.lt.s32.totalorder %v1355, %v516
    %v1357 = vsel %vm1356, 1, 0
    %1358 = vset.pattern.permute.xlu0 0
    %1359 = vperm.xlu0 %1358, %v1357
    %v1360 = vpop.permute.xlu0 %1359
    %vm1361 = vcmp.eq.s32.totalorder %v1360, 1
    %v1362 = vsel %vm1361, %v1353, %v1225
    %v1363 = vsel %vm1361, %v1351, %v1226
    %s1364 = smul.u32 5, 4
    %s1365 = smul.addr %s1364, 8
    %s1366 = scalar_lea.vmem [#allocation4], %s1365
    %v1367 = vld [vmem:[%s1366] sm:$0xff]
    %v1368 = vld [vmem:[%s1366 + $0x8] sm:$0xff]
    %v1369 = vld [vmem:[%s1366 + $0x10] sm:$0xff]
    %v1370 = vld [vmem:[%s1366 + $0x18] sm:$0xff]
    %v1371 = vpack.c.bf16 %v1362, %v1362
    %1372 = vmatpush.bf16.msra.mxu0 %v652
    %1373 = vmatpush.bf16.msra.mxu0 %v648
    %1374 = vmatpush.bf16.msra.mxu0 %v644
    %1375 = vmatpush.bf16.msra.mxu0 %v640
    %1376 = vmatpush.bf16.msra.mxu0 %v636
    %1377 = vmatpush.bf16.msra.mxu0 %v632
    %1378 = vmatpush.bf16.msra.mxu0 %v628
    %1379 = vmatpush.bf16.msra.mxu0 %v624
    %1380 = vmatmul.bf16.gmra.mxu0 %v1371
    %v1381 = vpop.f32.mrf.mxu0
    %v1382 = vadd.f32 0.0, %v1381
    %v1383 = vpop.f32.mrf.mxu0
    %1384 = vdwg.mxu0
    %1385 = vmatpush.bf16.msra.mxu0 %v653
    %1386 = vmatpush.bf16.msra.mxu0 %v649
    %1387 = vmatpush.bf16.msra.mxu0 %v645
    %1388 = vmatpush.bf16.msra.mxu0 %v641
    %1389 = vmatpush.bf16.msra.mxu0 %v637
    %1390 = vmatpush.bf16.msra.mxu0 %v633
    %1391 = vmatpush.bf16.msra.mxu0 %v629
    %1392 = vmatpush.bf16.msra.mxu0 %v625
    %1393 = vmatmul.bf16.gmra.mxu0 %v1371
    %v1394 = vpop.f32.mrf.mxu0
    %v1395 = vadd.f32 0.0, %v1394
    %v1396 = vpop.f32.mrf.mxu0
    %1397 = vdwg.mxu0
    %1398 = vmatpush.bf16.msra.mxu0 %v654
    %1399 = vmatpush.bf16.msra.mxu0 %v650
    %1400 = vmatpush.bf16.msra.mxu0 %v646
    %1401 = vmatpush.bf16.msra.mxu0 %v642
    %1402 = vmatpush.bf16.msra.mxu0 %v638
    %1403 = vmatpush.bf16.msra.mxu0 %v634
    %1404 = vmatpush.bf16.msra.mxu0 %v630
    %1405 = vmatpush.bf16.msra.mxu0 %v626
    %1406 = vmatmul.bf16.gmra.mxu0 %v1371
    %v1407 = vpop.f32.mrf.mxu0
    %v1408 = vadd.f32 0.0, %v1407
    %v1409 = vpop.f32.mrf.mxu0
    %1410 = vdwg.mxu0
    %1411 = vmatpush.bf16.msra.mxu0 %v655
    %1412 = vmatpush.bf16.msra.mxu0 %v651
    %1413 = vmatpush.bf16.msra.mxu0 %v647
    %1414 = vmatpush.bf16.msra.mxu0 %v643
    %1415 = vmatpush.bf16.msra.mxu0 %v639
    %1416 = vmatpush.bf16.msra.mxu0 %v635
    %1417 = vmatpush.bf16.msra.mxu0 %v631
    %1418 = vmatpush.bf16.msra.mxu0 %v627
    %1419 = vmatmul.bf16.gmra.mxu0 %v1371
    %v1420 = vpop.f32.mrf.mxu0
    %v1421 = vadd.f32 0.0, %v1420
    %v1422 = vpop.f32.mrf.mxu0
    %1423 = vdwg.mxu0
    %v1424 = vadd.f32 %v1367, %v1382
    %v1425 = vadd.f32 %v1368, %v1395
    %v1426 = vadd.f32 %v1369, %v1408
    %v1427 = vadd.f32 %v1370, %v1421
    %v1428 = vxor.u32 %v1424, 2147483648
    %v1429 = vxor.u32 %v1425, 2147483648
    %v1430 = vxor.u32 %v1426, 2147483648
    %v1431 = vmul.f32 %v1428, 1.442695
    %v1432 = vpow.pop %v1431
    %v1433 = vmul.f32 %v1429, 1.442695
    %v1434 = vpow.pop %v1433
    %v1435 = vmul.f32 %v1430, 1.442695
    %v1436 = vpow.pop %v1435
    %v1437 = vadd.f32 %v1432, 1.0
    %v1438 = vadd.f32 %v1434, 1.0
    %v1439 = vadd.f32 %v1436, 1.0
    %v1440 = vrcp.pop %v1437
    %v1441 = vmul.f32 %v1437, %v1440
    %v1442 = vsub.f32 1.0, %v1441
    %v1443 = vmul.f32 %v1440, %v1442
    %v1444 = vadd.f32 %v1440, %v1443
    %vm1445 = vweird.f32 %v1437
    %vm1446 = vweird.f32 %v1440
    %vm1447 = vmor %vm1445, %vm1446
    %v1448 = vsel %vm1447, %v1440, %v1444
    %v1449 = vand.u32 2147483647, %v1437
    %vm1450 = vcmp.eq.f32.partialorder %v1449, 8.507059e+37
    %v1451 = vand.u32 %v1437, 2147483648
    %v1452 = vor.u32 1.1754944e-38, %v1451
    %v1453 = vsel %vm1450, %v1452, %v1448
    %v1454 = vmul.f32 1.0, %v1453
    %v1455 = vrcp.pop %v1438
    %v1456 = vmul.f32 %v1438, %v1455
    %v1457 = vsub.f32 1.0, %v1456
    %v1458 = vmul.f32 %v1455, %v1457
    %v1459 = vadd.f32 %v1455, %v1458
    %vm1460 = vweird.f32 %v1438
    %vm1461 = vweird.f32 %v1455
    %vm1462 = vmor %vm1460, %vm1461
    %v1463 = vsel %vm1462, %v1455, %v1459
    %v1464 = vand.u32 2147483647, %v1438
    %vm1465 = vcmp.eq.f32.partialorder %v1464, 8.507059e+37
    %v1466 = vand.u32 %v1438, 2147483648
    %v1467 = vor.u32 1.1754944e-38, %v1466
    %v1468 = vsel %vm1465, %v1467, %v1463
    %v1469 = vmul.f32 1.0, %v1468
    %v1470 = vrcp.pop %v1439
    %v1471 = vmul.f32 %v1439, %v1470
    %v1472 = vsub.f32 1.0, %v1471
    %v1473 = vmul.f32 %v1470, %v1472
    %v1474 = vadd.f32 %v1470, %v1473
    %vm1475 = vweird.f32 %v1439
    %vm1476 = vweird.f32 %v1470
    %vm1477 = vmor %vm1475, %vm1476
    %v1478 = vsel %vm1477, %v1470, %v1474
    %v1479 = vand.u32 2147483647, %v1439
    %vm1480 = vcmp.eq.f32.partialorder %v1479, 8.507059e+37
    %v1481 = vand.u32 %v1439, 2147483648
    %v1482 = vor.u32 1.1754944e-38, %v1481
    %v1483 = vsel %vm1480, %v1482, %v1478
    %v1484 = vmul.f32 1.0, %v1483
    %v1485 = vtanh.pop %v1427
    %v1486 = vmul.f32 %v1469, %v1363
    %v1487 = vmul.f32 %v1454, %v1485
    %v1488 = vadd.f32 %v1486, %v1487
    %v1489 = vtanh.pop %v1488
    %v1490 = vmul.f32 %v1484, %v1489
    %s1491 = sadd.s32 %s517, 5
    %v1492 = vstv %s1491
    %vm1493 = vcmp.lt.s32.totalorder %v1492, %v516
    %v1494 = vsel %vm1493, 1, 0
    %1495 = vset.pattern.permute.xlu0 0
    %1496 = vperm.xlu0 %1495, %v1494
    %v1497 = vpop.permute.xlu0 %1496
    %vm1498 = vcmp.eq.s32.totalorder %v1497, 1
    %v1499 = vsel %vm1498, %v1490, %v1362
    %v1500 = vsel %vm1498, %v1488, %v1363
    %s1501 = smul.u32 6, 4
    %s1502 = smul.addr %s1501, 8
    %s1503 = scalar_lea.vmem [#allocation4], %s1502
    %v1504 = vld [vmem:[%s1503] sm:$0xff]
    %v1505 = vld [vmem:[%s1503 + $0x8] sm:$0xff]
    %v1506 = vld [vmem:[%s1503 + $0x10] sm:$0xff]
    %v1507 = vld [vmem:[%s1503 + $0x18] sm:$0xff]
    %v1508 = vpack.c.bf16 %v1499, %v1499
    %1509 = vmatpush.bf16.msra.mxu0 %v652
    %1510 = vmatpush.bf16.msra.mxu0 %v648
    %1511 = vmatpush.bf16.msra.mxu0 %v644
    %1512 = vmatpush.bf16.msra.mxu0 %v640
    %1513 = vmatpush.bf16.msra.mxu0 %v636
    %1514 = vmatpush.bf16.msra.mxu0 %v632
    %1515 = vmatpush.bf16.msra.mxu0 %v628
    %1516 = vmatpush.bf16.msra.mxu0 %v624
    %1517 = vmatmul.bf16.gmra.mxu0 %v1508
    %v1518 = vpop.f32.mrf.mxu0
    %v1519 = vadd.f32 0.0, %v1518
    %v1520 = vpop.f32.mrf.mxu0
    %1521 = vdwg.mxu0
    %1522 = vmatpush.bf16.msra.mxu0 %v653
    %1523 = vmatpush.bf16.msra.mxu0 %v649
    %1524 = vmatpush.bf16.msra.mxu0 %v645
    %1525 = vmatpush.bf16.msra.mxu0 %v641
    %1526 = vmatpush.bf16.msra.mxu0 %v637
    %1527 = vmatpush.bf16.msra.mxu0 %v633
    %1528 = vmatpush.bf16.msra.mxu0 %v629
    %1529 = vmatpush.bf16.msra.mxu0 %v625
    %1530 = vmatmul.bf16.gmra.mxu0 %v1508
    %v1531 = vpop.f32.mrf.mxu0
    %v1532 = vadd.f32 0.0, %v1531
    %v1533 = vpop.f32.mrf.mxu0
    %1534 = vdwg.mxu0
    %1535 = vmatpush.bf16.msra.mxu0 %v654
    %1536 = vmatpush.bf16.msra.mxu0 %v650
    %1537 = vmatpush.bf16.msra.mxu0 %v646
    %1538 = vmatpush.bf16.msra.mxu0 %v642
    %1539 = vmatpush.bf16.msra.mxu0 %v638
    %1540 = vmatpush.bf16.msra.mxu0 %v634
    %1541 = vmatpush.bf16.msra.mxu0 %v630
    %1542 = vmatpush.bf16.msra.mxu0 %v626
    %1543 = vmatmul.bf16.gmra.mxu0 %v1508
    %v1544 = vpop.f32.mrf.mxu0
    %v1545 = vadd.f32 0.0, %v1544
    %v1546 = vpop.f32.mrf.mxu0
    %1547 = vdwg.mxu0
    %1548 = vmatpush.bf16.msra.mxu0 %v655
    %1549 = vmatpush.bf16.msra.mxu0 %v651
    %1550 = vmatpush.bf16.msra.mxu0 %v647
    %1551 = vmatpush.bf16.msra.mxu0 %v643
    %1552 = vmatpush.bf16.msra.mxu0 %v639
    %1553 = vmatpush.bf16.msra.mxu0 %v635
    %1554 = vmatpush.bf16.msra.mxu0 %v631
    %1555 = vmatpush.bf16.msra.mxu0 %v627
    %1556 = vmatmul.bf16.gmra.mxu0 %v1508
    %v1557 = vpop.f32.mrf.mxu0
    %v1558 = vadd.f32 0.0, %v1557
    %v1559 = vpop.f32.mrf.mxu0
    %1560 = vdwg.mxu0
    %v1561 = vadd.f32 %v1504, %v1519
    %v1562 = vadd.f32 %v1505, %v1532
    %v1563 = vadd.f32 %v1506, %v1545
    %v1564 = vadd.f32 %v1507, %v1558
    %v1565 = vxor.u32 %v1561, 2147483648
    %v1566 = vxor.u32 %v1562, 2147483648
    %v1567 = vxor.u32 %v1563, 2147483648
    %v1568 = vmul.f32 %v1565, 1.442695
    %v1569 = vpow.pop %v1568
    %v1570 = vmul.f32 %v1566, 1.442695
    %v1571 = vpow.pop %v1570
    %v1572 = vmul.f32 %v1567, 1.442695
    %v1573 = vpow.pop %v1572
    %v1574 = vadd.f32 %v1569, 1.0
    %v1575 = vadd.f32 %v1571, 1.0
    %v1576 = vadd.f32 %v1573, 1.0
    %v1577 = vrcp.pop %v1574
    %v1578 = vmul.f32 %v1574, %v1577
    %v1579 = vsub.f32 1.0, %v1578
    %v1580 = vmul.f32 %v1577, %v1579
    %v1581 = vadd.f32 %v1577, %v1580
    %vm1582 = vweird.f32 %v1574
    %vm1583 = vweird.f32 %v1577
    %vm1584 = vmor %vm1582, %vm1583
    %v1585 = vsel %vm1584, %v1577, %v1581
    %v1586 = vand.u32 2147483647, %v1574
    %vm1587 = vcmp.eq.f32.partialorder %v1586, 8.507059e+37
    %v1588 = vand.u32 %v1574, 2147483648
    %v1589 = vor.u32 1.1754944e-38, %v1588
    %v1590 = vsel %vm1587, %v1589, %v1585
    %v1591 = vmul.f32 1.0, %v1590
    %v1592 = vrcp.pop %v1575
    %v1593 = vmul.f32 %v1575, %v1592
    %v1594 = vsub.f32 1.0, %v1593
    %v1595 = vmul.f32 %v1592, %v1594
    %v1596 = vadd.f32 %v1592, %v1595
    %vm1597 = vweird.f32 %v1575
    %vm1598 = vweird.f32 %v1592
    %vm1599 = vmor %vm1597, %vm1598
    %v1600 = vsel %vm1599, %v1592, %v1596
    %v1601 = vand.u32 2147483647, %v1575
    %vm1602 = vcmp.eq.f32.partialorder %v1601, 8.507059e+37
    %v1603 = vand.u32 %v1575, 2147483648
    %v1604 = vor.u32 1.1754944e-38, %v1603
    %v1605 = vsel %vm1602, %v1604, %v1600
    %v1606 = vmul.f32 1.0, %v1605
    %v1607 = vrcp.pop %v1576
    %v1608 = vmul.f32 %v1576, %v1607
    %v1609 = vsub.f32 1.0, %v1608
    %v1610 = vmul.f32 %v1607, %v1609
    %v1611 = vadd.f32 %v1607, %v1610
    %vm1612 = vweird.f32 %v1576
    %vm1613 = vweird.f32 %v1607
    %vm1614 = vmor %vm1612, %vm1613
    %v1615 = vsel %vm1614, %v1607, %v1611
    %v1616 = vand.u32 2147483647, %v1576
    %vm1617 = vcmp.eq.f32.partialorder %v1616, 8.507059e+37
    %v1618 = vand.u32 %v1576, 2147483648
    %v1619 = vor.u32 1.1754944e-38, %v1618
    %v1620 = vsel %vm1617, %v1619, %v1615
    %v1621 = vmul.f32 1.0, %v1620
    %v1622 = vtanh.pop %v1564
    %v1623 = vmul.f32 %v1606, %v1500
    %v1624 = vmul.f32 %v1591, %v1622
    %v1625 = vadd.f32 %v1623, %v1624
    %v1626 = vtanh.pop %v1625
    %v1627 = vmul.f32 %v1621, %v1626
    %s1628 = sadd.s32 %s517, 6
    %v1629 = vstv %s1628
    %vm1630 = vcmp.lt.s32.totalorder %v1629, %v516
    %v1631 = vsel %vm1630, 1, 0
    %1632 = vset.pattern.permute.xlu0 0
    %1633 = vperm.xlu0 %1632, %v1631
    %v1634 = vpop.permute.xlu0 %1633
    %vm1635 = vcmp.eq.s32.totalorder %v1634, 1
    %v1636 = vsel %vm1635, %v1627, %v1499
    %v1637 = vsel %vm1635, %v1625, %v1500
    %s1638 = smul.u32 7, 4
    %s1639 = smul.addr %s1638, 8
    %s1640 = scalar_lea.vmem [#allocation4], %s1639
    %v1641 = vld [vmem:[%s1640] sm:$0xff]
    %v1642 = vld [vmem:[%s1640 + $0x8] sm:$0xff]
    %v1643 = vld [vmem:[%s1640 + $0x10] sm:$0xff]
    %v1644 = vld [vmem:[%s1640 + $0x18] sm:$0xff]
    %v1645 = vpack.c.bf16 %v1636, %v1636
    %1646 = vmatpush.bf16.msra.mxu0 %v652
    %1647 = vmatpush.bf16.msra.mxu0 %v648
    %1648 = vmatpush.bf16.msra.mxu0 %v644
    %1649 = vmatpush.bf16.msra.mxu0 %v640
    %1650 = vmatpush.bf16.msra.mxu0 %v636
    %1651 = vmatpush.bf16.msra.mxu0 %v632
    %1652 = vmatpush.bf16.msra.mxu0 %v628
    %1653 = vmatpush.bf16.msra.mxu0 %v624
    %1654 = vmatmul.bf16.gmra.mxu0 %v1645
    %v1655 = vpop.f32.mrf.mxu0
    %v1656 = vadd.f32 0.0, %v1655
    %v1657 = vpop.f32.mrf.mxu0
    %1658 = vdwg.mxu0
    %1659 = vmatpush.bf16.msra.mxu0 %v653
    %1660 = vmatpush.bf16.msra.mxu0 %v649
    %1661 = vmatpush.bf16.msra.mxu0 %v645
    %1662 = vmatpush.bf16.msra.mxu0 %v641
    %1663 = vmatpush.bf16.msra.mxu0 %v637
    %1664 = vmatpush.bf16.msra.mxu0 %v633
    %1665 = vmatpush.bf16.msra.mxu0 %v629
    %1666 = vmatpush.bf16.msra.mxu0 %v625
    %1667 = vmatmul.bf16.gmra.mxu0 %v1645
    %v1668 = vpop.f32.mrf.mxu0
    %v1669 = vadd.f32 0.0, %v1668
    %v1670 = vpop.f32.mrf.mxu0
    %1671 = vdwg.mxu0
    %1672 = vmatpush.bf16.msra.mxu0 %v654
    %1673 = vmatpush.bf16.msra.mxu0 %v650
    %1674 = vmatpush.bf16.msra.mxu0 %v646
    %1675 = vmatpush.bf16.msra.mxu0 %v642
    %1676 = vmatpush.bf16.msra.mxu0 %v638
    %1677 = vmatpush.bf16.msra.mxu0 %v634
    %1678 = vmatpush.bf16.msra.mxu0 %v630
    %1679 = vmatpush.bf16.msra.mxu0 %v626
    %1680 = vmatmul.bf16.gmra.mxu0 %v1645
    %v1681 = vpop.f32.mrf.mxu0
    %v1682 = vadd.f32 0.0, %v1681
    %v1683 = vpop.f32.mrf.mxu0
    %1684 = vdwg.mxu0
    %1685 = vmatpush.bf16.msra.mxu0 %v655
    %1686 = vmatpush.bf16.msra.mxu0 %v651
    %1687 = vmatpush.bf16.msra.mxu0 %v647
    %1688 = vmatpush.bf16.msra.mxu0 %v643
    %1689 = vmatpush.bf16.msra.mxu0 %v639
    %1690 = vmatpush.bf16.msra.mxu0 %v635
    %1691 = vmatpush.bf16.msra.mxu0 %v631
    %1692 = vmatpush.bf16.msra.mxu0 %v627
    %1693 = vmatmul.bf16.gmra.mxu0 %v1645
    %v1694 = vpop.f32.mrf.mxu0
    %v1695 = vadd.f32 0.0, %v1694
    %v1696 = vpop.f32.mrf.mxu0
    %1697 = vdwg.mxu0
    %v1698 = vadd.f32 %v1641, %v1656
    %v1699 = vadd.f32 %v1642, %v1669
    %v1700 = vadd.f32 %v1643, %v1682
    %v1701 = vadd.f32 %v1644, %v1695
    %v1702 = vxor.u32 %v1698, 2147483648
    %v1703 = vxor.u32 %v1699, 2147483648
    %v1704 = vxor.u32 %v1700, 2147483648
    %v1705 = vmul.f32 %v1702, 1.442695
    %v1706 = vpow.pop %v1705
    %v1707 = vmul.f32 %v1703, 1.442695
    %v1708 = vpow.pop %v1707
    %v1709 = vmul.f32 %v1704, 1.442695
    %v1710 = vpow.pop %v1709
    %v1711 = vadd.f32 %v1706, 1.0
    %v1712 = vadd.f32 %v1708, 1.0
    %v1713 = vadd.f32 %v1710, 1.0
    %v1714 = vrcp.pop %v1711
    %v1715 = vmul.f32 %v1711, %v1714
    %v1716 = vsub.f32 1.0, %v1715
    %v1717 = vmul.f32 %v1714, %v1716
    %v1718 = vadd.f32 %v1714, %v1717
    %vm1719 = vweird.f32 %v1711
    %vm1720 = vweird.f32 %v1714
    %vm1721 = vmor %vm1719, %vm1720
    %v1722 = vsel %vm1721, %v1714, %v1718
    %v1723 = vand.u32 2147483647, %v1711
    %vm1724 = vcmp.eq.f32.partialorder %v1723, 8.507059e+37
    %v1725 = vand.u32 %v1711, 2147483648
    %v1726 = vor.u32 1.1754944e-38, %v1725
    %v1727 = vsel %vm1724, %v1726, %v1722
    %v1728 = vmul.f32 1.0, %v1727
    %v1729 = vrcp.pop %v1712
    %v1730 = vmul.f32 %v1712, %v1729
    %v1731 = vsub.f32 1.0, %v1730
    %v1732 = vmul.f32 %v1729, %v1731
    %v1733 = vadd.f32 %v1729, %v1732
    %vm1734 = vweird.f32 %v1712
    %vm1735 = vweird.f32 %v1729
    %vm1736 = vmor %vm1734, %vm1735
    %v1737 = vsel %vm1736, %v1729, %v1733
    %v1738 = vand.u32 2147483647, %v1712
    %vm1739 = vcmp.eq.f32.partialorder %v1738, 8.507059e+37
    %v1740 = vand.u32 %v1712, 2147483648
    %v1741 = vor.u32 1.1754944e-38, %v1740
    %v1742 = vsel %vm1739, %v1741, %v1737
    %v1743 = vmul.f32 1.0, %v1742
    %v1744 = vrcp.pop %v1713
    %v1745 = vmul.f32 %v1713, %v1744
    %v1746 = vsub.f32 1.0, %v1745
    %v1747 = vmul.f32 %v1744, %v1746
    %v1748 = vadd.f32 %v1744, %v1747
    %vm1749 = vweird.f32 %v1713
    %vm1750 = vweird.f32 %v1744
    %vm1751 = vmor %vm1749, %vm1750
    %v1752 = vsel %vm1751, %v1744, %v1748
    %v1753 = vand.u32 2147483647, %v1713
    %vm1754 = vcmp.eq.f32.partialorder %v1753, 8.507059e+37
    %v1755 = vand.u32 %v1713, 2147483648
    %v1756 = vor.u32 1.1754944e-38, %v1755
    %v1757 = vsel %vm1754, %v1756, %v1752
    %v1758 = vmul.f32 1.0, %v1757
    %v1759 = vtanh.pop %v1701
    %v1760 = vmul.f32 %v1743, %v1637
    %v1761 = vmul.f32 %v1728, %v1759
    %v1762 = vadd.f32 %v1760, %v1761
    %v1763 = vtanh.pop %v1762
    %v1764 = vmul.f32 %v1758, %v1763
    %s1765 = sadd.s32 %s517, 7
    %v1766 = vstv %s1765
    %vm1767 = vcmp.lt.s32.totalorder %v1766, %v516
    %v1768 = vsel %vm1767, 1, 0
    %1769 = vset.pattern.permute.xlu0 0
    %1770 = vperm.xlu0 %1769, %v1768
    %v1771 = vpop.permute.xlu0 %1770
    %vm1772 = vcmp.eq.s32.totalorder %v1771, 1
    %v1773 = vsel %vm1772, %v1764, %v1636
    %v1774 = vsel %vm1772, %v1762, %v1637
    %1775 = vst [vmem:[#allocation2] sm:$0xff] %v1773
    %1776 = vst [vmem:[#allocation3] sm:$0xff] %v1774
    // Predicated region
    $region54: #{tpu_custom_call.1} parent=1 // pred_check
      %p1777 = pneg %p96
    $region55: #{tpu_custom_call.1} parent=1 // pred_check_branch
      %1779 = sbr.rel (%p1777) target = $region57
    $region56: #{tpu_custom_call.1} parent=1 // pred_region
      %v1780 = vld [vmem:[#allocation11] sm:$0xff]
      %v1781 = vld [vmem:[#allocation11 + $0x8] sm:$0xff]
      %v1782 = vld [vmem:[#allocation11 + $0x10] sm:$0xff]
      %v1783 = vld [vmem:[#allocation11 + $0x18] sm:$0xff]
      %v1784 = vld [vmem:[#allocation11 + $0x20] sm:$0xff]
      %v1785 = vld [vmem:[#allocation11 + $0x28] sm:$0xff]
      %v1786 = vld [vmem:[#allocation11 + $0x30] sm:$0xff]
      %v1787 = vld [vmem:[#allocation11 + $0x38] sm:$0xff]
      %v1788 = vld [vmem:[#allocation11 + $0x40] sm:$0xff]
      %v1789 = vld [vmem:[#allocation11 + $0x48] sm:$0xff]
      %v1790 = vld [vmem:[#allocation11 + $0x50] sm:$0xff]
      %v1791 = vld [vmem:[#allocation11 + $0x58] sm:$0xff]
      %v1792 = vld [vmem:[#allocation11 + $0x60] sm:$0xff]
      %v1793 = vld [vmem:[#allocation11 + $0x68] sm:$0xff]
      %v1794 = vld [vmem:[#allocation11 + $0x70] sm:$0xff]
      %v1795 = vld [vmem:[#allocation11 + $0x78] sm:$0xff]
      %v1796 = vld [vmem:[%s6] sm:$0x1]
      %v1798 = vperm.slane %v1796, 0
      %1800 = vmatpush.msra.mxu0 %v1795
      %1801 = vmatpush.msra.mxu0 %v1794
      %1802 = vmatpush.msra.mxu0 %v1793
      %1803 = vmatpush.msra.mxu0 %v1792
      %1804 = vmatpush.msra.mxu0 %v1791
      %1805 = vmatpush.msra.mxu0 %v1790
      %1806 = vmatpush.msra.mxu0 %v1789
      %1807 = vmatpush.msra.mxu0 %v1788
      %1808 = vmatpush.msra.mxu0 %v1787
      %1809 = vmatpush.msra.mxu0 %v1786
      %1810 = vmatpush.msra.mxu0 %v1785
      %1811 = vmatpush.msra.mxu0 %v1784
      %1812 = vmatpush.msra.mxu0 %v1783
      %1813 = vmatpush.msra.mxu0 %v1782
      %1814 = vmatpush.msra.mxu0 %v1781
      %1815 = vmatpush.msra.mxu0 %v1780
      %1816 = vmatmul.f32.gmra.mxu0 %v1773
      %v1817 = vpop.f32.mrf.mxu0
      %v1818 = vadd.f32 %v1798, %v1817
      %1819 = vdwg.mxu0
      %1820 = vst [vmem:[#allocation13] sm:$0xff] %v1818
      %1821 = vmax.xlane.f32.xlu0 %v1818
      %v1822 = vpop.xlane.xlu0 %1821
      %v1823 = vsub.f32 %v1818, %v1822
      %v1824 = vmul.f32 %v1823, 1.442695
      %v1825 = vpow.pop %v1824
      %1826 = vadd.xlane.f32.xlu0 %v1825
      %v1827 = vpop.xlane.xlu0 %1826
      %v1828 = vlog2.pop %v1827
      %v1829 = vmul.f32 %v1828, 0.6931472
      %v1830 = vadd.f32 %v1822, %v1829
      %v1831 = vsub.f32 %v1818, %v1830
      %v1832 = vld [vmem:[%s7] sm:$0xff]
      %v1833 = vmul.f32 %v1832, %v1831
      %v1834 = vsub.f32 0.0, %v1833
      %1835 = vst [vmem:[#allocation14] sm:$0xff] %v1834
    $region57: #{tpu_custom_call.1} parent=1 // pred_fallthru
      _
    // Predicated region
    $region58: #{tpu_custom_call.1} parent=1 // pred_check
      _
    $region59: #{tpu_custom_call.1} parent=1 // pred_check_branch
      %1837 = sbr.rel (0) target = $region61
    $region60: #{tpu_custom_call.1} parent=1 // pred_region
      %1839 = vsyncadd [#allocation7], 0
      %s1841 = sshll.u32 [#allocation13], 4
      %s1842 = int_to_ptr.vmem [resolvable:$true] %s1841
      %s1843 = sshll.u32 %s8, 4
      %s1844 = int_to_ptr.hbm [resolvable:$true] %s1843
      %1846 = dma.vmem_to_hbm [thread:$0]  %s1842, 128, %s1844, [#allocation7]
    $region61: #{tpu_custom_call.1} parent=1 // pred_fallthru
      _
    // Predicated region
    $region62: #{tpu_custom_call.1} parent=1 // pred_check
      _
    $region63: #{tpu_custom_call.1} parent=1 // pred_check_branch
      %1848 = sbr.rel (0) target = $region65
    $region64: #{tpu_custom_call.1} parent=1 // pred_region
      %1850 = vsyncadd [#allocation15], 0
      %s1852 = sshll.u32 [#allocation14], 4
      %s1853 = int_to_ptr.vmem [resolvable:$true] %s1852
      %s1854 = sshll.u32 %s9, 4
      %s1855 = int_to_ptr.hbm [resolvable:$true] %s1854
      %1857 = dma.vmem_to_hbm [thread:$0]  %s1853, 128, %s1855, [#allocation15]
    $region65: #{tpu_custom_call.1} parent=1 // pred_fallthru
      _
    // Predicated region
    $region66: #{tpu_custom_call.1} parent=1 // pred_check
      _
    $region67: #{tpu_custom_call.1} parent=1 // pred_check_branch
      %1859 = sbr.rel (0) target = $region69
    $region68: #{tpu_custom_call.1} parent=1 // pred_region
      %1861 = dma.done [#allocation7], 128
    $region69: #{tpu_custom_call.1} parent=1 // pred_fallthru
      _
    // Predicated region
    $region70: #{tpu_custom_call.1} parent=1 // pred_check
      _
    $region71: #{tpu_custom_call.1} parent=1 // pred_check_branch
      %1863 = sbr.rel (0) target = $region73
    $region72: #{tpu_custom_call.1} parent=1 // pred_region
      %1865 = dma.done [#allocation15], 128
    $region73: #{tpu_custom_call.1} parent=1 // pred_fallthru
      _
    %1866 = vsyncpa [#allocation6], 1
    %1867 = vsyncpa [#allocation9], 1
    %1868 = vsyncpa [#allocation12], 1
    %1869 = vsyncpa [#allocation7], 1
    %1870 = vsyncpa [#allocation15], 1

</llo_original>
